<compile_context>
chip_gen: v7x
topology: tpu7x:2x2x1
jax: 0.10.0
libtpu: 0.0.40
codegen_flags: <defaults>
</compile_context>

<pallas_src>
import functools

import jax
import jax.numpy as jnp
from jax.experimental import pallas as pl
from jax.experimental.pallas import tpu as pltpu


INPUT_DIM = 70
HIDDEN_DIM = 256
LATENT_DIM = 64
HEAD_WIDTH = 128          # lane-dense packed head: 64 latent + 1 stress + pad
H1 = HIDDEN_DIM           # 256
H2 = HIDDEN_DIM // 2      # 128
H3 = HIDDEN_DIM // 4      # 64


def _facial_encoder_kernel(
    x_ref,
    w1_ref, b1_ref,
    w2_ref, b2_ref,
    w3_ref, b3_ref,
    wh_ref, bh_ref,
    out_ref,
):
    x = x_ref[...]

    # feature_extractor: 3x (Linear -> ReLU); Dropout = identity at inference.
    h = jnp.dot(x, w1_ref[...], preferred_element_type=jnp.float32) + b1_ref[...]
    h = jnp.maximum(h, 0.0)

    h = jnp.dot(h, w2_ref[...], preferred_element_type=jnp.float32) + b2_ref[...]
    h = jnp.maximum(h, 0.0)

    h = jnp.dot(h, w3_ref[...], preferred_element_type=jnp.float32) + b3_ref[...]
    h = jnp.maximum(h, 0.0)

    # Fused latent + stress head: one MXU push.
    #   head[:, :64]  = latent
    #   head[:,  64]  = stress logit
    #   head[:, 65:]  = 0 (zero-padded weight/bias columns)
    head = jnp.dot(h, wh_ref[...], preferred_element_type=jnp.float32) + bh_ref[...]

    # sigmoid -> exp + reciprocal (EUP slot); only lane 64 keeps it.
    sig = jax.nn.sigmoid(head)
    lane = jax.lax.broadcasted_iota(jnp.int32, head.shape, dimension=1)
    packed = jnp.where(
        lane < LATENT_DIM, head,
        jnp.where(lane == LATENT_DIM, sig, 0.0))

    out_ref[...] = packed.astype(out_ref.dtype)


@functools.partial(jax.jit, static_argnames=("block_b",))
def facial_encoder_forward(x, params, block_b=None):
    """x: (B, INPUT_DIM) float32. Returns (latent (B, LATENT_DIM), stress (B, 1))."""
    B, in_dim = x.shape
    assert in_dim == INPUT_DIM

    if block_b is None:
        # Big tiles (cap 256 rows, multiple of 128 when possible) while keeping
        # >= 2 grid steps for large B so both v7x TensorCores get work.
        block_b = min(256, max(8, -(-B // 2)))
        block_b = -(-block_b // 8) * 8  # round up to a multiple of 8 (sublanes)

    # Pad ragged batches up to a multiple of block_b; pad rows are harmless and
    # sliced off the outputs below.
    padded_B = -(-B // block_b) * block_b
    if padded_B != B:
        x = jnp.pad(x, ((0, padded_B - B), (0, 0)))

    w1, b1, w2, b2, w3, b3, wl, bl, ws, bs = params

    # Fuse latent_layer + stress_predictor into one (H3, 128) head matmul:
    #   latent       = h @ wl + bl
    #   stress_logit = latent @ ws + bs = h @ (wl @ ws) + (bl @ ws + bs)
    w_head = jnp.concatenate([wl, wl @ ws], axis=1)          # (H3, 65)
    b_head = jnp.concatenate([bl, bl @ ws + bs], axis=1)     # (1, 65)
    w_head = jnp.pad(w_head, ((0, 0), (0, HEAD_WIDTH - (LATENT_DIM + 1))))
    b_head = jnp.pad(b_head, ((0, 0), (0, HEAD_WIDTH - (LATENT_DIM + 1))))

    grid = (padded_B // block_b,)

    def x_map(i):
        return (i, 0)

    def full_map(i):
        # Constant block index -> Pallas keeps these tiny weights resident in
        # VMEM across grid steps (no re-DMA).
        return (0, 0)

    weight_specs = [
        pl.BlockSpec((INPUT_DIM, H1), full_map),
        pl.BlockSpec((1, H1), full_map),
        pl.BlockSpec((H1, H2), full_map),
        pl.BlockSpec((1, H2), full_map),
        pl.BlockSpec((H2, H3), full_map),
        pl.BlockSpec((1, H3), full_map),
        pl.BlockSpec((H3, HEAD_WIDTH), full_map),
        pl.BlockSpec((1, HEAD_WIDTH), full_map),
    ]

    packed = pl.pallas_call(
        _facial_encoder_kernel,
        out_shape=jax.ShapeDtypeStruct((padded_B, HEAD_WIDTH), jnp.float32),
        grid_spec=pltpu.PrefetchScalarGridSpec(
            num_scalar_prefetch=0,
            grid=grid,
            in_specs=[pl.BlockSpec((block_b, INPUT_DIM), x_map)] + weight_specs,
            out_specs=pl.BlockSpec((block_b, HEAD_WIDTH), x_map),
        ),
        compiler_params=pltpu.CompilerParams(
            dimension_semantics=("parallel",),
        ),
    )(x, w1, b1, w2, b2, w3, b3, w_head, b_head)

    latent = packed[:B, :LATENT_DIM]
    stress = packed[:B, LATENT_DIM:LATENT_DIM + 1]
    return latent, stress


def init_params(key):
    """PyTorch-style uniform(-1/sqrt(fan_in), 1/sqrt(fan_in)) init, deterministic."""
    dims = [
        (INPUT_DIM, HIDDEN_DIM),
        (HIDDEN_DIM, HIDDEN_DIM // 2),
        (HIDDEN_DIM // 2, HIDDEN_DIM // 4),
        (HIDDEN_DIM // 4, LATENT_DIM),
        (LATENT_DIM, 1),
    ]
    params = []
    for (fan_in, fan_out) in dims:
        key, kw, kb = jax.random.split(key, 3)
        bound = 1.0 / jnp.sqrt(jnp.float32(fan_in))
        w = jax.random.uniform(kw, (fan_in, fan_out), jnp.float32, -bound, bound)
        b = jax.random.uniform(kb, (1, fan_out), jnp.float32, -bound, bound)
        params.extend([w, b])
    return tuple(params)


def reference_forward(x, params):
    w1, b1, w2, b2, w3, b3, wl, bl, ws, bs = params
    h = jax.nn.relu(x @ w1 + b1)
    h = jax.nn.relu(h @ w2 + b2)
    h = jax.nn.relu(h @ w3 + b3)
    latent = h @ wl + bl
    stress = jax.nn.sigmoid(latent @ ws + bs)
    return latent, stress


if __name__ == "__main__":
    key = jax.random.PRNGKey(0)
    key, kx = jax.random.split(key)

    B = 500  # deliberately ragged: exercises batch padding + output slicing
    x = jax.random.normal(kx, (B, INPUT_DIM), jnp.float32)
    params = init_params(key)

    latent, stress = facial_encoder_forward(x, params)
    jax.block_until_ready((latent, stress))

    lat_ref, str_ref = reference_forward(x, params)
    assert latent.shape == (B, LATENT_DIM)
    assert stress.shape == (B, 1)
    # head fusion (wl @ ws precompute) reassociates FP -> allow ~1e-4
    assert jnp.allclose(latent, lat_ref, atol=1e-4, rtol=1e-4)
    assert jnp.allclose(stress, str_ref, atol=1e-4, rtol=1e-4)

    print("KERNEL_OK")
</pallas_src>

<mosaic_0001>
module attributes {stable_mosaic.version = 11 : i64} {
  func.func @_facial_encoder_kernel(%arg0: i32, %arg1: memref<256x70xf32, #tpu.memory_space<vmem>>, %arg2: memref<70x256xf32, #tpu.memory_space<vmem>>, %arg3: memref<1x256xf32, #tpu.memory_space<vmem>>, %arg4: memref<256x128xf32, #tpu.memory_space<vmem>>, %arg5: memref<1x128xf32, #tpu.memory_space<vmem>>, %arg6: memref<128x64xf32, #tpu.memory_space<vmem>>, %arg7: memref<1x64xf32, #tpu.memory_space<vmem>>, %arg8: memref<64x128xf32, #tpu.memory_space<vmem>>, %arg9: memref<1x128xf32, #tpu.memory_space<vmem>>, %arg10: memref<256x128xf32, #tpu.memory_space<vmem>>) attributes {dimension_semantics = [#tpu.dimension_semantics<parallel>], iteration_bounds = array<i64: 2>, scalar_prefetch = 0 : i64, scratch_operands = 0 : i64, tpu.core_type = #tpu.core_type<tc>, window_params = [{transform_indices = @transform_0, window_bounds = array<i64: 256, 70>}, {pipeline_mode = #tpu.pipeline_mode<synchronous>, transform_indices = @transform_1, window_bounds = array<i64: 70, 256>}, {pipeline_mode = #tpu.pipeline_mode<synchronous>, transform_indices = @transform_2, window_bounds = array<i64: 1, 256>}, {pipeline_mode = #tpu.pipeline_mode<synchronous>, transform_indices = @transform_3, window_bounds = array<i64: 256, 128>}, {pipeline_mode = #tpu.pipeline_mode<synchronous>, transform_indices = @transform_4, window_bounds = array<i64: 1, 128>}, {pipeline_mode = #tpu.pipeline_mode<synchronous>, transform_indices = @transform_5, window_bounds = array<i64: 128, 64>}, {pipeline_mode = #tpu.pipeline_mode<synchronous>, transform_indices = @transform_6, window_bounds = array<i64: 1, 64>}, {pipeline_mode = #tpu.pipeline_mode<synchronous>, transform_indices = @transform_7, window_bounds = array<i64: 64, 128>}, {pipeline_mode = #tpu.pipeline_mode<synchronous>, transform_indices = @transform_8, window_bounds = array<i64: 1, 128>}, {transform_indices = @transform_9, window_bounds = array<i64: 256, 128>}]} {
    %c0 = arith.constant 0 : index
    %c0_0 = arith.constant 0 : index
    %0 = vector.load %arg1[%c0, %c0_0] : memref<256x70xf32, #tpu.memory_space<vmem>>, vector<256x70xf32>
    %c0_1 = arith.constant 0 : index
    %c0_2 = arith.constant 0 : index
    %1 = vector.load %arg2[%c0_1, %c0_2] : memref<70x256xf32, #tpu.memory_space<vmem>>, vector<70x256xf32>
    %cst = arith.constant dense<0.000000e+00> : vector<256x256xf32>
    %2 = tpu.matmul %0, %1, %cst {dimension_numbers = #tpu.dot_dimension_numbers<[1], [0], [0], [1], [0, 0, 1, 1], [], []>} : vector<256x70xf32>, vector<70x256xf32>, vector<256x256xf32> -> vector<256x256xf32>
    %c0_3 = arith.constant 0 : index
    %c0_4 = arith.constant 0 : index
    %3 = vector.load %arg3[%c0_3, %c0_4] : memref<1x256xf32, #tpu.memory_space<vmem>>, vector<1x256xf32>
    %4 = vector.broadcast %3 : vector<1x256xf32> to vector<256x256xf32>
    %5 = arith.addf %2, %4 : vector<256x256xf32>
    %cst_5 = arith.constant 0.000000e+00 : f32
    %6 = vector.broadcast %cst_5 : f32 to vector<256x256xf32>
    %7 = arith.maximumf %5, %6 : vector<256x256xf32>
    %c0_6 = arith.constant 0 : index
    %c0_7 = arith.constant 0 : index
    %8 = vector.load %arg4[%c0_6, %c0_7] : memref<256x128xf32, #tpu.memory_space<vmem>>, vector<256x128xf32>
    %cst_8 = arith.constant dense<0.000000e+00> : vector<256x128xf32>
    %9 = tpu.matmul %7, %8, %cst_8 {dimension_numbers = #tpu.dot_dimension_numbers<[1], [0], [0], [1], [0, 0, 1, 1], [], []>} : vector<256x256xf32>, vector<256x128xf32>, vector<256x128xf32> -> vector<256x128xf32>
    %c0_9 = arith.constant 0 : index
    %c0_10 = arith.constant 0 : index
    %10 = vector.load %arg5[%c0_9, %c0_10] : memref<1x128xf32, #tpu.memory_space<vmem>>, vector<1x128xf32>
    %11 = vector.broadcast %10 : vector<1x128xf32> to vector<256x128xf32>
    %12 = arith.addf %9, %11 : vector<256x128xf32>
    %cst_11 = arith.constant 0.000000e+00 : f32
    %13 = vector.broadcast %cst_11 : f32 to vector<256x128xf32>
    %14 = arith.maximumf %12, %13 : vector<256x128xf32>
    %c0_12 = arith.constant 0 : index
    %c0_13 = arith.constant 0 : index
    %15 = vector.load %arg6[%c0_12, %c0_13] : memref<128x64xf32, #tpu.memory_space<vmem>>, vector<128x64xf32>
    %cst_14 = arith.constant dense<0.000000e+00> : vector<256x64xf32>
    %16 = tpu.matmul %14, %15, %cst_14 {dimension_numbers = #tpu.dot_dimension_numbers<[1], [0], [0], [1], [0, 0, 1, 1], [], []>} : vector<256x128xf32>, vector<128x64xf32>, vector<256x64xf32> -> vector<256x64xf32>
    %c0_15 = arith.constant 0 : index
    %c0_16 = arith.constant 0 : index
    %17 = vector.load %arg7[%c0_15, %c0_16] : memref<1x64xf32, #tpu.memory_space<vmem>>, vector<1x64xf32>
    %18 = vector.broadcast %17 : vector<1x64xf32> to vector<256x64xf32>
    %19 = arith.addf %16, %18 : vector<256x64xf32>
    %cst_17 = arith.constant 0.000000e+00 : f32
    %20 = vector.broadcast %cst_17 : f32 to vector<256x64xf32>
    %21 = arith.maximumf %19, %20 : vector<256x64xf32>
    %c0_18 = arith.constant 0 : index
    %c0_19 = arith.constant 0 : index
    %22 = vector.load %arg8[%c0_18, %c0_19] : memref<64x128xf32, #tpu.memory_space<vmem>>, vector<64x128xf32>
    %cst_20 = arith.constant dense<0.000000e+00> : vector<256x128xf32>
    %23 = tpu.matmul %21, %22, %cst_20 {dimension_numbers = #tpu.dot_dimension_numbers<[1], [0], [0], [1], [0, 0, 1, 1], [], []>} : vector<256x64xf32>, vector<64x128xf32>, vector<256x128xf32> -> vector<256x128xf32>
    %c0_21 = arith.constant 0 : index
    %c0_22 = arith.constant 0 : index
    %24 = vector.load %arg9[%c0_21, %c0_22] : memref<1x128xf32, #tpu.memory_space<vmem>>, vector<1x128xf32>
    %25 = vector.broadcast %24 : vector<1x128xf32> to vector<256x128xf32>
    %26 = arith.addf %23, %25 : vector<256x128xf32>
    %27 = arith.negf %26 : vector<256x128xf32>
    %28 = math.exp %27 : vector<256x128xf32>
    %cst_23 = arith.constant 1.000000e+00 : f32
    %29 = vector.broadcast %cst_23 : f32 to vector<256x128xf32>
    %30 = arith.addf %29, %28 : vector<256x128xf32>
    %31 = arith.divf %29, %30 : vector<256x128xf32>
    %32 = tpu.iota {dimensions = array<i32: 1>} : vector<256x128xi32>
    %c64_i32 = arith.constant 64 : i32
    %33 = vector.broadcast %c64_i32 : i32 to vector<256x128xi32>
    %34 = arith.cmpi slt, %32, %33 : vector<256x128xi32>
    %c64_i32_24 = arith.constant 64 : i32
    %35 = vector.broadcast %c64_i32_24 : i32 to vector<256x128xi32>
    %36 = arith.cmpi eq, %32, %35 : vector<256x128xi32>
    %cst_25 = arith.constant 0.000000e+00 : f32
    %37 = vector.broadcast %cst_25 : f32 to vector<256x128xf32>
    %38 = arith.select %36, %31, %37 : vector<256x128xi1>, vector<256x128xf32>
    %39 = arith.select %34, %26, %38 : vector<256x128xi1>, vector<256x128xf32>
    %c0_26 = arith.constant 0 : index
    %c0_27 = arith.constant 0 : index
    %40 = vector.load %arg10[%c0_26, %c0_27] : memref<256x128xf32, #tpu.memory_space<vmem>>, vector<256x128xf32>
    tpu.vector_store %arg10[%c0_26, %c0_27], %39 {strides = array<i32>} : memref<256x128xf32, #tpu.memory_space<vmem>>, vector<256x128xf32>,
    return
  }
  func.func @transform_0(%arg0: i32) -> (i32, i32) {
    %c0_i32 = arith.constant 0 : i32
    %c0_i32_0 = arith.constant 0 : i32
    return %arg0, %c0_i32 : i32, i32
  }
  func.func @transform_1(%arg0: i32) -> (i32, i32) {
    %c0_i32 = arith.constant 0 : i32
    %c0_i32_0 = arith.constant 0 : i32
    %c0_i32_1 = arith.constant 0 : i32
    return %c0_i32, %c0_i32_0 : i32, i32
  }
  func.func @transform_2(%arg0: i32) -> (i32, i32) {
    %c0_i32 = arith.constant 0 : i32
    %c0_i32_0 = arith.constant 0 : i32
    %c0_i32_1 = arith.constant 0 : i32
    return %c0_i32, %c0_i32_0 : i32, i32
  }
  func.func @transform_3(%arg0: i32) -> (i32, i32) {
    %c0_i32 = arith.constant 0 : i32
    %c0_i32_0 = arith.constant 0 : i32
    %c0_i32_1 = arith.constant 0 : i32
    return %c0_i32, %c0_i32_0 : i32, i32
  }
  func.func @transform_4(%arg0: i32) -> (i32, i32) {
    %c0_i32 = arith.constant 0 : i32
    %c0_i32_0 = arith.constant 0 : i32
    %c0_i32_1 = arith.constant 0 : i32
    return %c0_i32, %c0_i32_0 : i32, i32
  }
  func.func @transform_5(%arg0: i32) -> (i32, i32) {
    %c0_i32 = arith.constant 0 : i32
    %c0_i32_0 = arith.constant 0 : i32
    %c0_i32_1 = arith.constant 0 : i32
    return %c0_i32, %c0_i32_0 : i32, i32
  }
  func.func @transform_6(%arg0: i32) -> (i32, i32) {
    %c0_i32 = arith.constant 0 : i32
    %c0_i32_0 = arith.constant 0 : i32
    %c0_i32_1 = arith.constant 0 : i32
    return %c0_i32, %c0_i32_0 : i32, i32
  }
  func.func @transform_7(%arg0: i32) -> (i32, i32) {
    %c0_i32 = arith.constant 0 : i32
    %c0_i32_0 = arith.constant 0 : i32
    %c0_i32_1 = arith.constant 0 : i32
    return %c0_i32, %c0_i32_0 : i32, i32
  }
  func.func @transform_8(%arg0: i32) -> (i32, i32) {
    %c0_i32 = arith.constant 0 : i32
    %c0_i32_0 = arith.constant 0 : i32
    %c0_i32_1 = arith.constant 0 : i32
    return %c0_i32, %c0_i32_0 : i32, i32
  }
  func.func @transform_9(%arg0: i32) -> (i32, i32) {
    %c0_i32 = arith.constant 0 : i32
    %c0_i32_0 = arith.constant 0 : i32
    return %arg0, %c0_i32 : i32, i32
  }
}

</mosaic_0001>

<llo_original>
// kernel: facial_encoder_forward.1
$region0: #{facial_encoder_forward.1}
  #allocation0 [shape = 'u32[]', space=smem, size = 0x4, offset = 0x4, fixed_abs, tag = 'smem constant byte address 0x4 - core index']
  #allocation1 [shape = 'u32[144,128]{1,0:T(1,128)}', space=vmem, size = 0x12000, scoped, tag = 'internal scratch']
  %s0 = inlined_call_operand.vmem [shape: f32[512,70], index: 0, kind: input, shape index: {}]
  %s1 = inlined_call_operand.vmem [shape: f32[70,256], index: 1, kind: input, shape index: {}]
  %s2 = inlined_call_operand.vmem [shape: f32[1,256], index: 2, kind: input, shape index: {}]
  %s3 = inlined_call_operand.vmem [shape: f32[256,128], index: 3, kind: input, shape index: {}]
  %s4 = inlined_call_operand.vmem [shape: f32[1,128], index: 4, kind: input, shape index: {}]
  %s5 = inlined_call_operand.vmem [shape: f32[128,64], index: 5, kind: input, shape index: {}]
  %s6 = inlined_call_operand.vmem [shape: f32[1,64], index: 6, kind: input, shape index: {}]
  %s7 = inlined_call_operand.vmem [shape: f32[64,128], index: 7, kind: input, shape index: {}]
  %s8 = inlined_call_operand.vmem [shape: f32[1,128], index: 8, kind: input, shape index: {}]
  %s9 = inlined_call_operand.vmem [shape: f32[512,128], index: 9, kind: output, shape index: {}]
  %s10 = sld [smem:[#allocation0]]
  $region69: #{facial_encoder_forward.1} parent=0
    _
  %s12 = ssub.s32 1, %s10
  %s13 = scalar_select 0, %s12, %s10
  loop: start=0, step=1, limit=4
  $region2: #{facial_encoder_forward.1} parent=0 // loop_pre_header
    _
  $region3: #{facial_encoder_forward.1} parent=0 // loop_header
    %s15 = sphi 0, %s19
    %p16 = scmp.ge.s32.totalorder %s15, 4
    %s25 = sphi 0, %s27
    %s28 = sphi 0, %s25
    %s29 = sphi 0, %s28
    %s45 = sphi 0, %s29
    %s49 = sphi 0, %s49
    %s51 = sphi 0, %s49
    %s52 = sphi 0, %s51
    %s66 = sphi 0, %s52
    %s70 = sphi 0, %s70
    %s72 = sphi 0, %s70
    %s73 = sphi 0, %s72
    %s87 = sphi 0, %s73
    %s91 = sphi 0, %s91
    %s93 = sphi 0, %s91
    %s94 = sphi 0, %s93
    %s108 = sphi 0, %s94
    %s112 = sphi 0, %s112
    %s114 = sphi 0, %s112
    %s115 = sphi 0, %s114
    %s129 = sphi 0, %s115
    %s133 = sphi 0, %s133
    %s135 = sphi 0, %s133
    %s136 = sphi 0, %s135
    %s150 = sphi 0, %s136
    %s154 = sphi 0, %s154
    %s156 = sphi 0, %s154
    %s157 = sphi 0, %s156
    %s171 = sphi 0, %s157
    %s175 = sphi 0, %s175
    %s177 = sphi 0, %s175
    %s178 = sphi 0, %s177
    %s192 = sphi 0, %s178
    %s196 = sphi 0, %s196
    %s198 = sphi 0, %s196
    %s199 = sphi 0, %s198
    %s213 = sphi 0, %s199
    %s219 = sphi 0, %s221
    %s222 = sphi 0, %s219
    %s223 = sphi 0, %s222
    %s239 = sphi 0, %s223
  $region4: #{facial_encoder_forward.1} parent=0 // loop_header_branch
    %18 = sbr.rel (%p16) target = $region8
  $region5: #{facial_encoder_forward.1} parent=0 // loop_body
    %s20 = ssub.s32 %s15, 1
    %s21 = ssub.s32 %s15, 2
    %s22 = sadd.s32 %s15, 1
    %s23 = ssub.s32 %s15, %s22
    %p24 = scmp.eq.s32.totalorder %s23, 0
    %s26 = sadd.s32 %s25, 1
    %s27 = scalar_select %p24, %s25, %s26
    %p30 = pneg %p24
    %p31 = scmp.eq.s32.totalorder %s15, 1
    %p32 = por %p30, %p31
    %p33 = scmp.ne.s32.totalorder %s25, %s28
    %p34 = scmp.eq.s32.totalorder %s15, 0
    %p35 = por %p33, %p34
    %p36 = scmp.ne.s32.totalorder %s25, %s28
    %p37 = scmp.eq.s32.totalorder %s20, 1
    %p38 = por %p36, %p37
    %p39 = scmp.ne.s32.totalorder %s28, %s29
    %p40 = scmp.eq.s32.totalorder %s20, 0
    %p41 = por %p39, %p40
    %p42 = scmp.ne.s32.totalorder %s28, %s29
    %p43 = scmp.eq.s32.totalorder %s21, 1
    %p44 = por %p42, %p43
    %p46 = scmp.ne.s32.totalorder %s29, %s45
    %p47 = scmp.eq.s32.totalorder %s21, 0
    %p48 = por %p46, %p47
    %s50 = sadd.s32 %s49, 1
    %p53 = scmp.eq.s32.totalorder %s15, 1
    %p54 = scmp.ne.s32.totalorder %s49, %s51
    %p55 = scmp.eq.s32.totalorder %s15, 0
    %p56 = por %p54, %p55
    %p57 = scmp.ne.s32.totalorder %s49, %s51
    %p58 = scmp.eq.s32.totalorder %s20, 1
    %p59 = por %p57, %p58
    %p60 = scmp.ne.s32.totalorder %s51, %s52
    %p61 = scmp.eq.s32.totalorder %s20, 0
    %p62 = por %p60, %p61
    %p63 = scmp.ne.s32.totalorder %s51, %s52
    %p64 = scmp.eq.s32.totalorder %s21, 1
    %p65 = por %p63, %p64
    %p67 = scmp.ne.s32.totalorder %s52, %s66
    %p68 = scmp.eq.s32.totalorder %s21, 0
    %p69 = por %p67, %p68
    %s71 = sadd.s32 %s70, 1
    %p74 = scmp.eq.s32.totalorder %s15, 1
    %p75 = scmp.ne.s32.totalorder %s70, %s72
    %p76 = scmp.eq.s32.totalorder %s15, 0
    %p77 = por %p75, %p76
    %p78 = scmp.ne.s32.totalorder %s70, %s72
    %p79 = scmp.eq.s32.totalorder %s20, 1
    %p80 = por %p78, %p79
    %p81 = scmp.ne.s32.totalorder %s72, %s73
    %p82 = scmp.eq.s32.totalorder %s20, 0
    %p83 = por %p81, %p82
    %p84 = scmp.ne.s32.totalorder %s72, %s73
    %p85 = scmp.eq.s32.totalorder %s21, 1
    %p86 = por %p84, %p85
    %p88 = scmp.ne.s32.totalorder %s73, %s87
    %p89 = scmp.eq.s32.totalorder %s21, 0
    %p90 = por %p88, %p89
    %s92 = sadd.s32 %s91, 1
    %p95 = scmp.eq.s32.totalorder %s15, 1
    %p96 = scmp.ne.s32.totalorder %s91, %s93
    %p97 = scmp.eq.s32.totalorder %s15, 0
    %p98 = por %p96, %p97
    %p99 = scmp.ne.s32.totalorder %s91, %s93
    %p100 = scmp.eq.s32.totalorder %s20, 1
    %p101 = por %p99, %p100
    %p102 = scmp.ne.s32.totalorder %s93, %s94
    %p103 = scmp.eq.s32.totalorder %s20, 0
    %p104 = por %p102, %p103
    %p105 = scmp.ne.s32.totalorder %s93, %s94
    %p106 = scmp.eq.s32.totalorder %s21, 1
    %p107 = por %p105, %p106
    %p109 = scmp.ne.s32.totalorder %s94, %s108
    %p110 = scmp.eq.s32.totalorder %s21, 0
    %p111 = por %p109, %p110
    %s113 = sadd.s32 %s112, 1
    %p116 = scmp.eq.s32.totalorder %s15, 1
    %p117 = scmp.ne.s32.totalorder %s112, %s114
    %p118 = scmp.eq.s32.totalorder %s15, 0
    %p119 = por %p117, %p118
    %p120 = scmp.ne.s32.totalorder %s112, %s114
    %p121 = scmp.eq.s32.totalorder %s20, 1
    %p122 = por %p120, %p121
    %p123 = scmp.ne.s32.totalorder %s114, %s115
    %p124 = scmp.eq.s32.totalorder %s20, 0
    %p125 = por %p123, %p124
    %p126 = scmp.ne.s32.totalorder %s114, %s115
    %p127 = scmp.eq.s32.totalorder %s21, 1
    %p128 = por %p126, %p127
    %p130 = scmp.ne.s32.totalorder %s115, %s129
    %p131 = scmp.eq.s32.totalorder %s21, 0
    %p132 = por %p130, %p131
    %s134 = sadd.s32 %s133, 1
    %p137 = scmp.eq.s32.totalorder %s15, 1
    %p138 = scmp.ne.s32.totalorder %s133, %s135
    %p139 = scmp.eq.s32.totalorder %s15, 0
    %p140 = por %p138, %p139
    %p141 = scmp.ne.s32.totalorder %s133, %s135
    %p142 = scmp.eq.s32.totalorder %s20, 1
    %p143 = por %p141, %p142
    %p144 = scmp.ne.s32.totalorder %s135, %s136
    %p145 = scmp.eq.s32.totalorder %s20, 0
    %p146 = por %p144, %p145
    %p147 = scmp.ne.s32.totalorder %s135, %s136
    %p148 = scmp.eq.s32.totalorder %s21, 1
    %p149 = por %p147, %p148
    %p151 = scmp.ne.s32.totalorder %s136, %s150
    %p152 = scmp.eq.s32.totalorder %s21, 0
    %p153 = por %p151, %p152
    %s155 = sadd.s32 %s154, 1
    %p158 = scmp.eq.s32.totalorder %s15, 1
    %p159 = scmp.ne.s32.totalorder %s154, %s156
    %p160 = scmp.eq.s32.totalorder %s15, 0
    %p161 = por %p159, %p160
    %p162 = scmp.ne.s32.totalorder %s154, %s156
    %p163 = scmp.eq.s32.totalorder %s20, 1
    %p164 = por %p162, %p163
    %p165 = scmp.ne.s32.totalorder %s156, %s157
    %p166 = scmp.eq.s32.totalorder %s20, 0
    %p167 = por %p165, %p166
    %p168 = scmp.ne.s32.totalorder %s156, %s157
    %p169 = scmp.eq.s32.totalorder %s21, 1
    %p170 = por %p168, %p169
    %p172 = scmp.ne.s32.totalorder %s157, %s171
    %p173 = scmp.eq.s32.totalorder %s21, 0
    %p174 = por %p172, %p173
    %s176 = sadd.s32 %s175, 1
    %p179 = scmp.eq.s32.totalorder %s15, 1
    %p180 = scmp.ne.s32.totalorder %s175, %s177
    %p181 = scmp.eq.s32.totalorder %s15, 0
    %p182 = por %p180, %p181
    %p183 = scmp.ne.s32.totalorder %s175, %s177
    %p184 = scmp.eq.s32.totalorder %s20, 1
    %p185 = por %p183, %p184
    %p186 = scmp.ne.s32.totalorder %s177, %s178
    %p187 = scmp.eq.s32.totalorder %s20, 0
    %p188 = por %p186, %p187
    %p189 = scmp.ne.s32.totalorder %s177, %s178
    %p190 = scmp.eq.s32.totalorder %s21, 1
    %p191 = por %p189, %p190
    %p193 = scmp.ne.s32.totalorder %s178, %s192
    %p194 = scmp.eq.s32.totalorder %s21, 0
    %p195 = por %p193, %p194
    %s197 = sadd.s32 %s196, 1
    %p200 = scmp.eq.s32.totalorder %s15, 1
    %p201 = scmp.ne.s32.totalorder %s196, %s198
    %p202 = scmp.eq.s32.totalorder %s15, 0
    %p203 = por %p201, %p202
    %p204 = scmp.ne.s32.totalorder %s196, %s198
    %p205 = scmp.eq.s32.totalorder %s20, 1
    %p206 = por %p204, %p205
    %p207 = scmp.ne.s32.totalorder %s198, %s199
    %p208 = scmp.eq.s32.totalorder %s20, 0
    %p209 = por %p207, %p208
    %p210 = scmp.ne.s32.totalorder %s198, %s199
    %p211 = scmp.eq.s32.totalorder %s21, 1
    %p212 = por %p210, %p211
    %p214 = scmp.ne.s32.totalorder %s199, %s213
    %p215 = scmp.eq.s32.totalorder %s21, 0
    %p216 = por %p214, %p215
    %s217 = ssub.s32 %s15, %s22
    %p218 = scmp.eq.s32.totalorder %s217, 0
    %s220 = sadd.s32 %s219, 1
    %s221 = scalar_select %p218, %s219, %s220
    %p224 = pneg %p218
    %p225 = scmp.eq.s32.totalorder %s15, 1
    %p226 = por %p224, %p225
    %p227 = scmp.ne.s32.totalorder %s219, %s222
    %p228 = scmp.eq.s32.totalorder %s15, 0
    %p229 = por %p227, %p228
    %p230 = scmp.ne.s32.totalorder %s219, %s222
    %p231 = scmp.eq.s32.totalorder %s20, 1
    %p232 = por %p230, %p231
    %p233 = scmp.ne.s32.totalorder %s222, %s223
    %p234 = scmp.eq.s32.totalorder %s20, 0
    %p235 = por %p233, %p234
    %p236 = scmp.ne.s32.totalorder %s222, %s223
    %p237 = scmp.eq.s32.totalorder %s21, 1
    %p238 = por %p236, %p237
    %p240 = scmp.ne.s32.totalorder %s223, %s239
    %p241 = scmp.eq.s32.totalorder %s21, 0
    %p242 = por %p240, %p241
    %p243 = scmp.le.s32.totalorder 1, %s15
    %p244 = scmp.lt.s32.totalorder %s15, 3
    %p245 = pnand %p243, %p244
    %p246 = pneg %p245
    // Predicated region
    $region9: #{facial_encoder_forward.1} parent=5 // pred_check
      _
    $region10: #{facial_encoder_forward.1} parent=5 // pred_check_branch
      %248 = sbr.rel (%p245) target = $region12
    $region11: #{facial_encoder_forward.1} parent=5 // pred_region
      %s249 = ssub.s32 %s15, 1
      // Predicated region
      $region13: #{facial_encoder_forward.1} parent=11 // pred_check
        %p250 = pneg %p62
      $region14: #{facial_encoder_forward.1} parent=11 // pred_check_branch
        %252 = sbr.rel (%p250) target = $region16
      $region15: #{facial_encoder_forward.1} parent=11 // pred_region
        _
      $region16: #{facial_encoder_forward.1} parent=11 // pred_fallthru
        _
      // Predicated region
      $region17: #{facial_encoder_forward.1} parent=11 // pred_check
        %p253 = pneg %p83
      $region18: #{facial_encoder_forward.1} parent=11 // pred_check_branch
        %255 = sbr.rel (%p253) target = $region20
      $region19: #{facial_encoder_forward.1} parent=11 // pred_region
        _
      $region20: #{facial_encoder_forward.1} parent=11 // pred_fallthru
        _
      // Predicated region
      $region21: #{facial_encoder_forward.1} parent=11 // pred_check
        %p256 = pneg %p104
      $region22: #{facial_encoder_forward.1} parent=11 // pred_check_branch
        %258 = sbr.rel (%p256) target = $region24
      $region23: #{facial_encoder_forward.1} parent=11 // pred_region
        _
      $region24: #{facial_encoder_forward.1} parent=11 // pred_fallthru
        _
      // Predicated region
      $region25: #{facial_encoder_forward.1} parent=11 // pred_check
        %p259 = pneg %p125
      $region26: #{facial_encoder_forward.1} parent=11 // pred_check_branch
        %261 = sbr.rel (%p259) target = $region28
      $region27: #{facial_encoder_forward.1} parent=11 // pred_region
        _
      $region28: #{facial_encoder_forward.1} parent=11 // pred_fallthru
        _
      // Predicated region
      $region29: #{facial_encoder_forward.1} parent=11 // pred_check
        %p262 = pneg %p146
      $region30: #{facial_encoder_forward.1} parent=11 // pred_check_branch
        %264 = sbr.rel (%p262) target = $region32
      $region31: #{facial_encoder_forward.1} parent=11 // pred_region
        _
      $region32: #{facial_encoder_forward.1} parent=11 // pred_fallthru
        _
      // Predicated region
      $region33: #{facial_encoder_forward.1} parent=11 // pred_check
        %p265 = pneg %p167
      $region34: #{facial_encoder_forward.1} parent=11 // pred_check_branch
        %267 = sbr.rel (%p265) target = $region36
      $region35: #{facial_encoder_forward.1} parent=11 // pred_region
        _
      $region36: #{facial_encoder_forward.1} parent=11 // pred_fallthru
        _
      // Predicated region
      $region37: #{facial_encoder_forward.1} parent=11 // pred_check
        %p268 = pneg %p188
      $region38: #{facial_encoder_forward.1} parent=11 // pred_check_branch
        %270 = sbr.rel (%p268) target = $region40
      $region39: #{facial_encoder_forward.1} parent=11 // pred_region
        _
      $region40: #{facial_encoder_forward.1} parent=11 // pred_fallthru
        _
      // Predicated region
      $region41: #{facial_encoder_forward.1} parent=11 // pred_check
        %p271 = pneg %p209
      $region42: #{facial_encoder_forward.1} parent=11 // pred_check_branch
        %273 = sbr.rel (%p271) target = $region44
      $region43: #{facial_encoder_forward.1} parent=11 // pred_region
        _
      $region44: #{facial_encoder_forward.1} parent=11 // pred_fallthru
        _
    $region12: #{facial_encoder_forward.1} parent=5 // pred_fallthru
      _
    %p274 = scmp.lt.s32.totalorder %s15, 2
    // Predicated region
    $region45: #{facial_encoder_forward.1} parent=5 // pred_check
      %p275 = pneg %p274
    $region46: #{facial_encoder_forward.1} parent=5 // pred_check_branch
      %277 = sbr.rel (%p275) target = $region48
    $region47: #{facial_encoder_forward.1} parent=5 // pred_region
      // Predicated region
      $region49: #{facial_encoder_forward.1} parent=47 // pred_check
        %p278 = pneg %p35
      $region50: #{facial_encoder_forward.1} parent=47 // pred_check_branch
        %280 = sbr.rel (%p278) target = $region52
      $region51: #{facial_encoder_forward.1} parent=47 // pred_region
        %s281 = smul.u32 32, %s15
        %p282 = scmp.lt.s32.totalorder %s281, 63
        %s283 = scalar_select %p282, %s281, 63
        %s284 = smul.addr %s283, 8
        %s285 = scalar_lea.vmem %s0, %s284
        %s286 = smul.u32 32, %s15
      $region52: #{facial_encoder_forward.1} parent=47 // pred_fallthru
        _
    $region48: #{facial_encoder_forward.1} parent=5 // pred_fallthru
      _
    %p287 = scmp.le.s32.totalorder 1, %s15
    %p288 = scmp.lt.s32.totalorder %s15, 3
    %p289 = pnand %p287, %p288
    %p290 = pneg %p289
    // Predicated region
    $region53: #{facial_encoder_forward.1} parent=5 // pred_check
      _
    $region54: #{facial_encoder_forward.1} parent=5 // pred_check_branch
      %292 = sbr.rel (%p289) target = $region56
    $region55: #{facial_encoder_forward.1} parent=5 // pred_region
      %s293 = ssub.s32 %s15, 1
      %s294 = smul.u32 32, %s20
      %p295 = scmp.lt.s32.totalorder %s294, 63
      %s296 = scalar_select %p295, %s294, 63
      %s297 = smul.addr %s296, 8
      %s298 = scalar_lea.vmem %s0, %s297
      %p299 = pneg %p41
      %p300 = pneg %p38
      %p301 = pneg %p62
      %p302 = pneg %p59
      %p303 = pneg %p83
      %p304 = pneg %p80
      %p305 = pneg %p104
      %p306 = pneg %p101
      %p307 = pneg %p125
      %p308 = pneg %p122
      %p309 = pneg %p146
      %p310 = pneg %p143
      %p311 = pneg %p167
      %p312 = pneg %p164
      %p313 = pneg %p188
      %p314 = pneg %p185
      %p315 = pneg %p209
      %p316 = pneg %p206
      %p317 = pneg %p235
      %p318 = pneg %p232
      %s319 = smul.u32 32, %s20
      %p320 = scmp.lt.s32.totalorder %s319, 63
      %s321 = scalar_select %p320, %s319, 63
      %s322 = smul.addr %s321, 8
      %s323 = scalar_lea.vmem %s9, %s322
      %s324 = smul.u32 32, %s20
      %p325 = scmp.lt.s32.totalorder %s324, 63
      %s326 = scalar_select %p325, %s324, 63
      %s327 = smul.addr %s326, 8
      %s328 = scalar_lea.vmem %s0, %s327
      %s329 = smul.u32 32, %s20
      %s330 = smul.u32 32, %s20
      %p331 = scmp.lt.s32.totalorder %s330, 63
      %s332 = scalar_select %p331, %s330, 63
      %s333 = smul.addr %s332, 8
      %s334 = scalar_lea.vmem %s9, %s333
      %s335 = smul.u32 32, %s20
      %v336 = vld [vmem:[%s328] sm:$0xff]
      %v337 = vld [vmem:[%s328 + $0x8] sm:$0xff]
      %v338 = vld [vmem:[%s328 + $0x10] sm:$0xff]
      %v339 = vld [vmem:[%s328 + $0x18] sm:$0xff]
      %v340 = vld [vmem:[%s328 + $0x20] sm:$0xff]
      %v341 = vld [vmem:[%s328 + $0x28] sm:$0xff]
      %v342 = vld [vmem:[%s328 + $0x30] sm:$0xff]
      %v343 = vld [vmem:[%s328 + $0x38] sm:$0xff]
      %v344 = vld [vmem:[%s328 + $0x40] sm:$0xff]
      %v345 = vld [vmem:[%s328 + $0x48] sm:$0xff]
      %v346 = vld [vmem:[%s328 + $0x50] sm:$0xff]
      %v347 = vld [vmem:[%s328 + $0x58] sm:$0xff]
      %v348 = vld [vmem:[%s328 + $0x60] sm:$0xff]
      %v349 = vld [vmem:[%s328 + $0x68] sm:$0xff]
      %v350 = vld [vmem:[%s328 + $0x70] sm:$0xff]
      %v351 = vld [vmem:[%s328 + $0x78] sm:$0xff]
      %v352 = vld [vmem:[%s328 + $0x80] sm:$0xff]
      %v353 = vld [vmem:[%s328 + $0x88] sm:$0xff]
      %v354 = vld [vmem:[%s328 + $0x90] sm:$0xff]
      %v355 = vld [vmem:[%s328 + $0x98] sm:$0xff]
      %v356 = vld [vmem:[%s328 + $0xa0] sm:$0xff]
      %v357 = vld [vmem:[%s328 + $0xa8] sm:$0xff]
      %v358 = vld [vmem:[%s328 + $0xb0] sm:$0xff]
      %v359 = vld [vmem:[%s328 + $0xb8] sm:$0xff]
      %v360 = vld [vmem:[%s328 + $0xc0] sm:$0xff]
      %v361 = vld [vmem:[%s328 + $0xc8] sm:$0xff]
      %v362 = vld [vmem:[%s328 + $0xd0] sm:$0xff]
      %v363 = vld [vmem:[%s328 + $0xd8] sm:$0xff]
      %v364 = vld [vmem:[%s328 + $0xe0] sm:$0xff]
      %v365 = vld [vmem:[%s328 + $0xe8] sm:$0xff]
      %v366 = vld [vmem:[%s328 + $0xf0] sm:$0xff]
      %v367 = vld [vmem:[%s328 + $0xf8] sm:$0xff]
      %v368 = vld [vmem:[%s1] sm:$0xff]
      %v369 = vld [vmem:[%s1 + $0x8] sm:$0xff]
      %v370 = vld [vmem:[%s1 + $0x10] sm:$0xff]
      %v371 = vld [vmem:[%s1 + $0x18] sm:$0xff]
      %v372 = vld [vmem:[%s1 + $0x20] sm:$0xff]
      %v373 = vld [vmem:[%s1 + $0x28] sm:$0xff]
      %v374 = vld [vmem:[%s1 + $0x30] sm:$0xff]
      %v375 = vld [vmem:[%s1 + $0x38] sm:$0xff]
      %v376 = vld [vmem:[%s1 + $0x40] sm:$0xff]
      %v377 = vld [vmem:[%s1 + $0x48] sm:$0xff]
      %v378 = vld [vmem:[%s1 + $0x50] sm:$0xff]
      %v379 = vld [vmem:[%s1 + $0x58] sm:$0xff]
      %v380 = vld [vmem:[%s1 + $0x60] sm:$0xff]
      %v381 = vld [vmem:[%s1 + $0x68] sm:$0xff]
      %v382 = vld [vmem:[%s1 + $0x70] sm:$0xff]
      %v383 = vld [vmem:[%s1 + $0x78] sm:$0xff]
      %v384 = vld [vmem:[%s1 + $0x80] sm:$0x3f]
      %v385 = vld [vmem:[%s1 + $0x88] sm:$0x3f]
      %v386 = vld [vmem:[%s2] sm:$0x3]
      %v388 = vlaneseq
      %v389 = vshrl.u32 %v388, 7
      %v390 = vsub.s32 0, %v389
      %v391 = vrot.slane %v386, %v390
      %v392 = vlaneseq
      %v393 = vshrl.u32 %v392, 7
      %v394 = vsub.s32 1, %v393
      %v395 = vrot.slane %v386, %v394
      %vm398 = vcmask 572416
      %v400 = vsel %vm398, %v336, 0
      %v403 = vsel %vm398, %v337, 0
      %v406 = vsel %vm398, %v338, 0
      %v409 = vsel %vm398, %v339, 0
      %v412 = vsel %vm398, %v340, 0
      %v415 = vsel %vm398, %v341, 0
      %v418 = vsel %vm398, %v342, 0
      %v421 = vsel %vm398, %v343, 0
      %v424 = vsel %vm398, %v344, 0
      %v427 = vsel %vm398, %v345, 0
      %v430 = vsel %vm398, %v346, 0
      %v433 = vsel %vm398, %v347, 0
      %v436 = vsel %vm398, %v348, 0
      %v439 = vsel %vm398, %v349, 0
      %v442 = vsel %vm398, %v350, 0
      %v445 = vsel %vm398, %v351, 0
      %v448 = vsel %vm398, %v352, 0
      %v451 = vsel %vm398, %v353, 0
      %v454 = vsel %vm398, %v354, 0
      %v457 = vsel %vm398, %v355, 0
      %v460 = vsel %vm398, %v356, 0
      %v463 = vsel %vm398, %v357, 0
      %v466 = vsel %vm398, %v358, 0
      %v469 = vsel %vm398, %v359, 0
      %v472 = vsel %vm398, %v360, 0
      %v475 = vsel %vm398, %v361, 0
      %v478 = vsel %vm398, %v362, 0
      %v481 = vsel %vm398, %v363, 0
      %v484 = vsel %vm398, %v364, 0
      %v487 = vsel %vm398, %v365, 0
      %v490 = vsel %vm398, %v366, 0
      %v493 = vsel %vm398, %v367, 0
      %vm495 = vcmask 1045504
      %v497 = vsel %vm495, %v384, 0
      %v500 = vsel %vm495, %v385, 0
      %502 = vmatprep.subr.mxu0 %v369
      %503 = vmatpush1.msra.mxu0 %v368
      %504 = vmatprep.subr.mxu0 %v371
      %505 = vmatpush1.msra.mxu0 %v370
      %506 = vmatprep.subr.mxu0 %v373
      %507 = vmatpush1.msra.mxu0 %v372
      %508 = vmatprep.subr.mxu0 %v375
      %509 = vmatpush1.msra.mxu0 %v374
      %510 = vmatprep.subr.mxu0 %v377
      %511 = vmatpush1.msra.mxu0 %v376
      %512 = vmatprep.subr.mxu0 %v379
      %513 = vmatpush1.msra.mxu0 %v378
      %514 = vmatprep.subr.mxu0 %v381
      %515 = vmatpush1.msra.mxu0 %v380
      %516 = vmatprep.subr.mxu0 %v383
      %517 = vmatpush1.msra.mxu0 %v382
      %518 = vmatprep.subr.mxu0 %v500
      %519 = vmatpush1.msra.mxu0 %v497
      %520 = vmatprep.subr.mxu0 0.0
      %521 = vmatpush1.msra.mxu0 0.0
      %522 = vmatprep.subr.mxu0 0.0
      %523 = vmatpush1.msra.mxu0 0.0
      %524 = vmatprep.subr.mxu0 0.0
      %525 = vmatpush1.msra.mxu0 0.0
      %526 = vmatprep.subr.mxu0 0.0
      %527 = vmatpush1.msra.mxu0 0.0
      %528 = vmatprep.subr.mxu0 0.0
      %529 = vmatpush1.msra.mxu0 0.0
      %530 = vmatprep.subr.mxu0 0.0
      %531 = vmatpush1.msra.mxu0 0.0
      %532 = vmatprep.subr.mxu0 0.0
      %533 = vmatpush1.msra.mxu0 0.0
      %534 = vmatprep.subr.mxu0 0.0
      %535 = vmatpush1.msra.mxu0 0.0
      %536 = vmatprep.subr.mxu0 0.0
      %537 = vmatpush1.msra.mxu0 0.0
      %538 = vmatprep.subr.mxu0 0.0
      %539 = vmatpush1.msra.mxu0 0.0
      %540 = vmatprep.subr.mxu0 0.0
      %541 = vmatpush1.msra.mxu0 0.0
      %542 = vmatprep.subr.mxu0 0.0
      %543 = vmatpush1.msra.mxu0 0.0
      %544 = vmatprep.subr.mxu0 0.0
      %545 = vmatpush1.msra.mxu0 0.0
      %546 = vmatprep.subr.mxu0 0.0
      %547 = vmatpush1.msra.mxu0 0.0
      %548 = vmatprep.subr.mxu0 0.0
      %549 = vmatpush1.msra.mxu0 0.0
      %550 = vmatprep.subr.mxu0 0.0
      %551 = vmatpush1.msra.mxu0 0.0
      %552 = vmatprep.subr.mxu0 0.0
      %553 = vmatpush1.msra.mxu0 0.0
      %554 = vmatprep.subr.mxu0 0.0
      %555 = vmatpush1.msra.mxu0 0.0
      %556 = vmatprep.subr.mxu0 0.0
      %557 = vmatpush1.msra.mxu0 0.0
      %558 = vmatprep.subr.mxu0 0.0
      %559 = vmatpush1.msra.mxu0 0.0
      %560 = vmatprep.subr.mxu0 0.0
      %561 = vmatpush1.msra.mxu0 0.0
      %562 = vmatprep.subr.mxu0 0.0
      %563 = vmatpush1.msra.mxu0 0.0
      %564 = vmatprep.subr.mxu0 0.0
      %565 = vmatpush1.msra.mxu0 0.0
      %566 = vmatprep.mubr.f32.mxu0 0.0
      %567 = vmatmul.mubr.f32.gmra.mrb[0].mxu0 %v400
      %v568 = vpop.f32.mrb[0].mxu0
      %v569 = vadd.f32 %v391, %v568
      %v570 = vpop.f32.mrb[0].mxu0
      %v571 = vadd.f32 %v395, %v570
      %572 = vmatprep.mubr.f32.mxu0 0.0
      %573 = vmatmul.mubr.f32.gmra.mrb[0].mxu0 %v403
      %v574 = vpop.f32.mrb[0].mxu0
      %v575 = vadd.f32 %v391, %v574
      %v576 = vpop.f32.mrb[0].mxu0
      %v577 = vadd.f32 %v395, %v576
      %578 = vmatprep.mubr.f32.mxu0 0.0
      %579 = vmatmul.mubr.f32.gmra.mrb[0].mxu0 %v406
      %v580 = vpop.f32.mrb[0].mxu0
      %v581 = vadd.f32 %v391, %v580
      %v582 = vpop.f32.mrb[0].mxu0
      %v583 = vadd.f32 %v395, %v582
      %584 = vmatprep.mubr.f32.mxu0 0.0
      %585 = vmatmul.mubr.f32.gmra.mrb[0].mxu0 %v409
      %v586 = vpop.f32.mrb[0].mxu0
      %v587 = vadd.f32 %v391, %v586
      %v588 = vpop.f32.mrb[0].mxu0
      %v589 = vadd.f32 %v395, %v588
      %590 = vmatprep.mubr.f32.mxu0 0.0
      %591 = vmatmul.mubr.f32.gmra.mrb[0].mxu0 %v412
      %v592 = vpop.f32.mrb[0].mxu0
      %v593 = vadd.f32 %v391, %v592
      %v594 = vpop.f32.mrb[0].mxu0
      %v595 = vadd.f32 %v395, %v594
      %596 = vmatprep.mubr.f32.mxu0 0.0
      %597 = vmatmul.mubr.f32.gmra.mrb[0].mxu0 %v415
      %v598 = vpop.f32.mrb[0].mxu0
      %v599 = vadd.f32 %v391, %v598
      %v600 = vpop.f32.mrb[0].mxu0
      %v601 = vadd.f32 %v395, %v600
      %602 = vmatprep.mubr.f32.mxu0 0.0
      %603 = vmatmul.mubr.f32.gmra.mrb[0].mxu0 %v418
      %v604 = vpop.f32.mrb[0].mxu0
      %v605 = vadd.f32 %v391, %v604
      %v606 = vpop.f32.mrb[0].mxu0
      %v607 = vadd.f32 %v395, %v606
      %608 = vmatprep.mubr.f32.mxu0 0.0
      %609 = vmatmul.mubr.f32.gmra.mrb[0].mxu0 %v421
      %v610 = vpop.f32.mrb[0].mxu0
      %v611 = vadd.f32 %v391, %v610
      %v612 = vpop.f32.mrb[0].mxu0
      %v613 = vadd.f32 %v395, %v612
      %614 = vmatprep.mubr.f32.mxu0 0.0
      %615 = vmatmul.mubr.f32.gmra.mrb[0].mxu0 %v424
      %v616 = vpop.f32.mrb[0].mxu0
      %v617 = vadd.f32 %v391, %v616
      %v618 = vpop.f32.mrb[0].mxu0
      %v619 = vadd.f32 %v395, %v618
      %620 = vmatprep.mubr.f32.mxu0 0.0
      %621 = vmatmul.mubr.f32.gmra.mrb[0].mxu0 %v427
      %v622 = vpop.f32.mrb[0].mxu0
      %v623 = vadd.f32 %v391, %v622
      %v624 = vpop.f32.mrb[0].mxu0
      %v625 = vadd.f32 %v395, %v624
      %626 = vmatprep.mubr.f32.mxu0 0.0
      %627 = vmatmul.mubr.f32.gmra.mrb[0].mxu0 %v430
      %v628 = vpop.f32.mrb[0].mxu0
      %v629 = vadd.f32 %v391, %v628
      %v630 = vpop.f32.mrb[0].mxu0
      %v631 = vadd.f32 %v395, %v630
      %632 = vmatprep.mubr.f32.mxu0 0.0
      %633 = vmatmul.mubr.f32.gmra.mrb[0].mxu0 %v433
      %v634 = vpop.f32.mrb[0].mxu0
      %v635 = vadd.f32 %v391, %v634
      %v636 = vpop.f32.mrb[0].mxu0
      %v637 = vadd.f32 %v395, %v636
      %638 = vmatprep.mubr.f32.mxu0 0.0
      %639 = vmatmul.mubr.f32.gmra.mrb[0].mxu0 %v436
      %v640 = vpop.f32.mrb[0].mxu0
      %v641 = vadd.f32 %v391, %v640
      %v642 = vpop.f32.mrb[0].mxu0
      %v643 = vadd.f32 %v395, %v642
      %644 = vmatprep.mubr.f32.mxu0 0.0
      %645 = vmatmul.mubr.f32.gmra.mrb[0].mxu0 %v439
      %v646 = vpop.f32.mrb[0].mxu0
      %v647 = vadd.f32 %v391, %v646
      %v648 = vpop.f32.mrb[0].mxu0
      %v649 = vadd.f32 %v395, %v648
      %650 = vmatprep.mubr.f32.mxu0 0.0
      %651 = vmatmul.mubr.f32.gmra.mrb[0].mxu0 %v442
      %v652 = vpop.f32.mrb[0].mxu0
      %v653 = vadd.f32 %v391, %v652
      %v654 = vpop.f32.mrb[0].mxu0
      %v655 = vadd.f32 %v395, %v654
      %656 = vmatprep.mubr.f32.mxu0 0.0
      %657 = vmatmul.mubr.f32.gmra.mrb[0].mxu0 %v445
      %v658 = vpop.f32.mrb[0].mxu0
      %v659 = vadd.f32 %v391, %v658
      %v660 = vpop.f32.mrb[0].mxu0
      %v661 = vadd.f32 %v395, %v660
      %662 = vmatprep.mubr.f32.mxu0 0.0
      %663 = vmatmul.mubr.f32.gmra.mrb[0].mxu0 %v448
      %v664 = vpop.f32.mrb[0].mxu0
      %v665 = vadd.f32 %v391, %v664
      %v666 = vpop.f32.mrb[0].mxu0
      %v667 = vadd.f32 %v395, %v666
      %668 = vmatprep.mubr.f32.mxu0 0.0
      %669 = vmatmul.mubr.f32.gmra.mrb[0].mxu0 %v451
      %v670 = vpop.f32.mrb[0].mxu0
      %v671 = vadd.f32 %v391, %v670
      %v672 = vpop.f32.mrb[0].mxu0
      %v673 = vadd.f32 %v395, %v672
      %674 = vmatprep.mubr.f32.mxu0 0.0
      %675 = vmatmul.mubr.f32.gmra.mrb[0].mxu0 %v454
      %v676 = vpop.f32.mrb[0].mxu0
      %v677 = vadd.f32 %v391, %v676
      %v678 = vpop.f32.mrb[0].mxu0
      %v679 = vadd.f32 %v395, %v678
      %680 = vmatprep.mubr.f32.mxu0 0.0
      %681 = vmatmul.mubr.f32.gmra.mrb[0].mxu0 %v457
      %v682 = vpop.f32.mrb[0].mxu0
      %v683 = vadd.f32 %v391, %v682
      %v684 = vpop.f32.mrb[0].mxu0
      %v685 = vadd.f32 %v395, %v684
      %686 = vmatprep.mubr.f32.mxu0 0.0
      %687 = vmatmul.mubr.f32.gmra.mrb[0].mxu0 %v460
      %v688 = vpop.f32.mrb[0].mxu0
      %v689 = vadd.f32 %v391, %v688
      %v690 = vpop.f32.mrb[0].mxu0
      %v691 = vadd.f32 %v395, %v690
      %692 = vmatprep.mubr.f32.mxu0 0.0
      %693 = vmatmul.mubr.f32.gmra.mrb[0].mxu0 %v463
      %v694 = vpop.f32.mrb[0].mxu0
      %v695 = vadd.f32 %v391, %v694
      %v696 = vpop.f32.mrb[0].mxu0
      %v697 = vadd.f32 %v395, %v696
      %698 = vmatprep.mubr.f32.mxu0 0.0
      %699 = vmatmul.mubr.f32.gmra.mrb[0].mxu0 %v466
      %v700 = vpop.f32.mrb[0].mxu0
      %v701 = vadd.f32 %v391, %v700
      %v702 = vpop.f32.mrb[0].mxu0
      %v703 = vadd.f32 %v395, %v702
      %704 = vmatprep.mubr.f32.mxu0 0.0
      %705 = vmatmul.mubr.f32.gmra.mrb[0].mxu0 %v469
      %v706 = vpop.f32.mrb[0].mxu0
      %v707 = vadd.f32 %v391, %v706
      %v708 = vpop.f32.mrb[0].mxu0
      %v709 = vadd.f32 %v395, %v708
      %710 = vmatprep.mubr.f32.mxu0 0.0
      %711 = vmatmul.mubr.f32.gmra.mrb[0].mxu0 %v472
      %v712 = vpop.f32.mrb[0].mxu0
      %v713 = vadd.f32 %v391, %v712
      %v714 = vpop.f32.mrb[0].mxu0
      %v715 = vadd.f32 %v395, %v714
      %716 = vmatprep.mubr.f32.mxu0 0.0
      %717 = vmatmul.mubr.f32.gmra.mrb[0].mxu0 %v475
      %v718 = vpop.f32.mrb[0].mxu0
      %v719 = vadd.f32 %v391, %v718
      %v720 = vpop.f32.mrb[0].mxu0
      %v721 = vadd.f32 %v395, %v720
      %722 = vmatprep.mubr.f32.mxu0 0.0
      %723 = vmatmul.mubr.f32.gmra.mrb[0].mxu0 %v478
      %v724 = vpop.f32.mrb[0].mxu0
      %v725 = vadd.f32 %v391, %v724
      %v726 = vpop.f32.mrb[0].mxu0
      %v727 = vadd.f32 %v395, %v726
      %728 = vmatprep.mubr.f32.mxu0 0.0
      %729 = vmatmul.mubr.f32.gmra.mrb[0].mxu0 %v481
      %v730 = vpop.f32.mrb[0].mxu0
      %v731 = vadd.f32 %v391, %v730
      %v732 = vpop.f32.mrb[0].mxu0
      %v733 = vadd.f32 %v395, %v732
      %734 = vmatprep.mubr.f32.mxu0 0.0
      %735 = vmatmul.mubr.f32.gmra.mrb[0].mxu0 %v484
      %v736 = vpop.f32.mrb[0].mxu0
      %v737 = vadd.f32 %v391, %v736
      %v738 = vpop.f32.mrb[0].mxu0
      %v739 = vadd.f32 %v395, %v738
      %740 = vmatprep.mubr.f32.mxu0 0.0
      %741 = vmatmul.mubr.f32.gmra.mrb[0].mxu0 %v487
      %v742 = vpop.f32.mrb[0].mxu0
      %v743 = vadd.f32 %v391, %v742
      %v744 = vpop.f32.mrb[0].mxu0
      %v745 = vadd.f32 %v395, %v744
      %746 = vmatprep.mubr.f32.mxu0 0.0
      %747 = vmatmul.mubr.f32.gmra.mrb[0].mxu0 %v490
      %v748 = vpop.f32.mrb[0].mxu0
      %v749 = vadd.f32 %v391, %v748
      %v750 = vpop.f32.mrb[0].mxu0
      %v751 = vadd.f32 %v395, %v750
      %752 = vmatprep.mubr.f32.mxu0 0.0
      %753 = vmatmul.mubr.f32.gmra.mrb[0].mxu0 %v493
      %v754 = vpop.f32.mrb[0].mxu0
      %v755 = vadd.f32 %v391, %v754
      %v756 = vpop.f32.mrb[0].mxu0
      %v757 = vadd.f32 %v395, %v756
      %758 = vdwg.mxu0
      %v759 = vmax.f32 %v569, 0.0
      %v760 = vmax.f32 %v571, 0.0
      %v761 = vmax.f32 %v575, 0.0
      %v762 = vmax.f32 %v577, 0.0
      %v763 = vmax.f32 %v581, 0.0
      %v764 = vmax.f32 %v583, 0.0
      %v765 = vmax.f32 %v587, 0.0
      %v766 = vmax.f32 %v589, 0.0
      %v767 = vmax.f32 %v593, 0.0
      %v768 = vmax.f32 %v595, 0.0
      %v769 = vmax.f32 %v599, 0.0
      %v770 = vmax.f32 %v601, 0.0
      %v771 = vmax.f32 %v605, 0.0
      %v772 = vmax.f32 %v607, 0.0
      %v773 = vmax.f32 %v611, 0.0
      %v774 = vmax.f32 %v613, 0.0
      %v775 = vmax.f32 %v617, 0.0
      %v776 = vmax.f32 %v619, 0.0
      %v777 = vmax.f32 %v623, 0.0
      %v778 = vmax.f32 %v625, 0.0
      %v779 = vmax.f32 %v629, 0.0
      %v780 = vmax.f32 %v631, 0.0
      %v781 = vmax.f32 %v635, 0.0
      %v782 = vmax.f32 %v637, 0.0
      %v783 = vmax.f32 %v641, 0.0
      %v784 = vmax.f32 %v643, 0.0
      %v785 = vmax.f32 %v647, 0.0
      %v786 = vmax.f32 %v649, 0.0
      %v787 = vmax.f32 %v653, 0.0
      %v788 = vmax.f32 %v655, 0.0
      %v789 = vmax.f32 %v659, 0.0
      %v790 = vmax.f32 %v661, 0.0
      %v791 = vmax.f32 %v665, 0.0
      %v792 = vmax.f32 %v667, 0.0
      %v793 = vmax.f32 %v671, 0.0
      %v794 = vmax.f32 %v673, 0.0
      %v795 = vmax.f32 %v677, 0.0
      %v796 = vmax.f32 %v679, 0.0
      %v797 = vmax.f32 %v683, 0.0
      %v798 = vmax.f32 %v685, 0.0
      %v799 = vmax.f32 %v689, 0.0
      %v800 = vmax.f32 %v691, 0.0
      %v801 = vmax.f32 %v695, 0.0
      %v802 = vmax.f32 %v697, 0.0
      %v803 = vmax.f32 %v701, 0.0
      %v804 = vmax.f32 %v703, 0.0
      %v805 = vmax.f32 %v707, 0.0
      %v806 = vmax.f32 %v709, 0.0
      %v807 = vmax.f32 %v713, 0.0
      %v808 = vmax.f32 %v715, 0.0
      %v809 = vmax.f32 %v719, 0.0
      %v810 = vmax.f32 %v721, 0.0
      %v811 = vmax.f32 %v725, 0.0
      %v812 = vmax.f32 %v727, 0.0
      %v813 = vmax.f32 %v731, 0.0
      %v814 = vmax.f32 %v733, 0.0
      %v815 = vmax.f32 %v737, 0.0
      %v816 = vmax.f32 %v739, 0.0
      %v817 = vmax.f32 %v743, 0.0
      %v818 = vmax.f32 %v745, 0.0
      %v819 = vmax.f32 %v749, 0.0
      %v820 = vmax.f32 %v751, 0.0
      %v821 = vmax.f32 %v755, 0.0
      %v822 = vmax.f32 %v757, 0.0
      %v823 = vld [vmem:[%s3] sm:$0xff]
      %v824 = vld [vmem:[%s3 + $0x8] sm:$0xff]
      %v825 = vld [vmem:[%s3 + $0x10] sm:$0xff]
      %v826 = vld [vmem:[%s3 + $0x18] sm:$0xff]
      %v827 = vld [vmem:[%s3 + $0x20] sm:$0xff]
      %v828 = vld [vmem:[%s3 + $0x28] sm:$0xff]
      %v829 = vld [vmem:[%s3 + $0x30] sm:$0xff]
      %v830 = vld [vmem:[%s3 + $0x38] sm:$0xff]
      %v831 = vld [vmem:[%s3 + $0x40] sm:$0xff]
      %v832 = vld [vmem:[%s3 + $0x48] sm:$0xff]
      %v833 = vld [vmem:[%s3 + $0x50] sm:$0xff]
      %v834 = vld [vmem:[%s3 + $0x58] sm:$0xff]
      %v835 = vld [vmem:[%s3 + $0x60] sm:$0xff]
      %v836 = vld [vmem:[%s3 + $0x68] sm:$0xff]
      %v837 = vld [vmem:[%s3 + $0x70] sm:$0xff]
      %v838 = vld [vmem:[%s3 + $0x78] sm:$0xff]
      %v839 = vld [vmem:[%s3 + $0x80] sm:$0xff]
      %v840 = vld [vmem:[%s3 + $0x88] sm:$0xff]
      %v841 = vld [vmem:[%s3 + $0x90] sm:$0xff]
      %v842 = vld [vmem:[%s3 + $0x98] sm:$0xff]
      %v843 = vld [vmem:[%s3 + $0xa0] sm:$0xff]
      %v844 = vld [vmem:[%s3 + $0xa8] sm:$0xff]
      %v845 = vld [vmem:[%s3 + $0xb0] sm:$0xff]
      %v846 = vld [vmem:[%s3 + $0xb8] sm:$0xff]
      %v847 = vld [vmem:[%s3 + $0xc0] sm:$0xff]
      %v848 = vld [vmem:[%s3 + $0xc8] sm:$0xff]
      %v849 = vld [vmem:[%s3 + $0xd0] sm:$0xff]
      %v850 = vld [vmem:[%s3 + $0xd8] sm:$0xff]
      %v851 = vld [vmem:[%s3 + $0xe0] sm:$0xff]
      %v852 = vld [vmem:[%s3 + $0xe8] sm:$0xff]
      %v853 = vld [vmem:[%s3 + $0xf0] sm:$0xff]
      %v854 = vld [vmem:[%s3 + $0xf8] sm:$0xff]
      %v855 = vld [vmem:[%s4] sm:$0x1]
      %v857 = vlaneseq
      %v858 = vshrl.u32 %v857, 7
      %v859 = vsub.s32 0, %v858
      %v860 = vrot.slane %v855, %v859
      %862 = vmatprep.subr.mxu0 0.0
      %863 = vmatpush1.msra.mxu0 %v823
      %864 = vmatprep.subr.mxu0 0.0
      %865 = vmatpush1.msra.mxu0 %v824
      %866 = vmatprep.subr.mxu0 0.0
      %867 = vmatpush1.msra.mxu0 %v825
      %868 = vmatprep.subr.mxu0 0.0
      %869 = vmatpush1.msra.mxu0 %v826
      %870 = vmatprep.subr.mxu0 0.0
      %871 = vmatpush1.msra.mxu0 %v827
      %872 = vmatprep.subr.mxu0 0.0
      %873 = vmatpush1.msra.mxu0 %v828
      %874 = vmatprep.subr.mxu0 0.0
      %875 = vmatpush1.msra.mxu0 %v829
      %876 = vmatprep.subr.mxu0 0.0
      %877 = vmatpush1.msra.mxu0 %v830
      %878 = vmatprep.subr.mxu0 0.0
      %879 = vmatpush1.msra.mxu0 %v831
      %880 = vmatprep.subr.mxu0 0.0
      %881 = vmatpush1.msra.mxu0 %v832
      %882 = vmatprep.subr.mxu0 0.0
      %883 = vmatpush1.msra.mxu0 %v833
      %884 = vmatprep.subr.mxu0 0.0
      %885 = vmatpush1.msra.mxu0 %v834
      %886 = vmatprep.subr.mxu0 0.0
      %887 = vmatpush1.msra.mxu0 %v835
      %888 = vmatprep.subr.mxu0 0.0
      %889 = vmatpush1.msra.mxu0 %v836
      %890 = vmatprep.subr.mxu0 0.0
      %891 = vmatpush1.msra.mxu0 %v837
      %892 = vmatprep.subr.mxu0 0.0
      %893 = vmatpush1.msra.mxu0 %v838
      %894 = vmatprep.subr.mxu0 0.0
      %895 = vmatpush1.msra.mxu0 %v839
      %896 = vmatprep.subr.mxu0 0.0
      %897 = vmatpush1.msra.mxu0 %v840
      %898 = vmatprep.subr.mxu0 0.0
      %899 = vmatpush1.msra.mxu0 %v841
      %900 = vmatprep.subr.mxu0 0.0
      %901 = vmatpush1.msra.mxu0 %v842
      %902 = vmatprep.subr.mxu0 0.0
      %903 = vmatpush1.msra.mxu0 %v843
      %904 = vmatprep.subr.mxu0 0.0
      %905 = vmatpush1.msra.mxu0 %v844
      %906 = vmatprep.subr.mxu0 0.0
      %907 = vmatpush1.msra.mxu0 %v845
      %908 = vmatprep.subr.mxu0 0.0
      %909 = vmatpush1.msra.mxu0 %v846
      %910 = vmatprep.subr.mxu0 0.0
      %911 = vmatpush1.msra.mxu0 %v847
      %912 = vmatprep.subr.mxu0 0.0
      %913 = vmatpush1.msra.mxu0 %v848
      %914 = vmatprep.subr.mxu0 0.0
      %915 = vmatpush1.msra.mxu0 %v849
      %916 = vmatprep.subr.mxu0 0.0
      %917 = vmatpush1.msra.mxu0 %v850
      %918 = vmatprep.subr.mxu0 0.0
      %919 = vmatpush1.msra.mxu0 %v851
      %920 = vmatprep.subr.mxu0 0.0
      %921 = vmatpush1.msra.mxu0 %v852
      %922 = vmatprep.subr.mxu0 0.0
      %923 = vmatpush1.msra.mxu0 %v853
      %924 = vmatprep.subr.mxu0 0.0
      %925 = vmatpush1.msra.mxu0 %v854
      %926 = vmatprep.mubr.f32.mxu0 %v760
      %927 = vmatmul.mubr.f32.gmra.mrb[0].mxu0 %v759
      %v928 = vpop.f32.mrb[0].mxu0
      %v929 = vadd.f32 %v860, %v928
      %v930 = vpop.f32.mrb[0].mxu0
      %931 = vmatprep.mubr.f32.mxu0 %v762
      %932 = vmatmul.mubr.f32.gmra.mrb[0].mxu0 %v761
      %v933 = vpop.f32.mrb[0].mxu0
      %v934 = vadd.f32 %v860, %v933
      %v935 = vpop.f32.mrb[0].mxu0
      %936 = vmatprep.mubr.f32.mxu0 %v764
      %937 = vmatmul.mubr.f32.gmra.mrb[0].mxu0 %v763
      %v938 = vpop.f32.mrb[0].mxu0
      %v939 = vadd.f32 %v860, %v938
      %v940 = vpop.f32.mrb[0].mxu0
      %941 = vmatprep.mubr.f32.mxu0 %v766
      %942 = vmatmul.mubr.f32.gmra.mrb[0].mxu0 %v765
      %v943 = vpop.f32.mrb[0].mxu0
      %v944 = vadd.f32 %v860, %v943
      %v945 = vpop.f32.mrb[0].mxu0
      %946 = vmatprep.mubr.f32.mxu0 %v768
      %947 = vmatmul.mubr.f32.gmra.mrb[0].mxu0 %v767
      %v948 = vpop.f32.mrb[0].mxu0
      %v949 = vadd.f32 %v860, %v948
      %v950 = vpop.f32.mrb[0].mxu0
      %951 = vmatprep.mubr.f32.mxu0 %v770
      %952 = vmatmul.mubr.f32.gmra.mrb[0].mxu0 %v769
      %v953 = vpop.f32.mrb[0].mxu0
      %v954 = vadd.f32 %v860, %v953
      %v955 = vpop.f32.mrb[0].mxu0
      %956 = vmatprep.mubr.f32.mxu0 %v772
      %957 = vmatmul.mubr.f32.gmra.mrb[0].mxu0 %v771
      %v958 = vpop.f32.mrb[0].mxu0
      %v959 = vadd.f32 %v860, %v958
      %v960 = vpop.f32.mrb[0].mxu0
      %961 = vmatprep.mubr.f32.mxu0 %v774
      %962 = vmatmul.mubr.f32.gmra.mrb[0].mxu0 %v773
      %v963 = vpop.f32.mrb[0].mxu0
      %v964 = vadd.f32 %v860, %v963
      %v965 = vpop.f32.mrb[0].mxu0
      %966 = vmatprep.mubr.f32.mxu0 %v776
      %967 = vmatmul.mubr.f32.gmra.mrb[0].mxu0 %v775
      %v968 = vpop.f32.mrb[0].mxu0
      %v969 = vadd.f32 %v860, %v968
      %v970 = vpop.f32.mrb[0].mxu0
      %971 = vmatprep.mubr.f32.mxu0 %v778
      %972 = vmatmul.mubr.f32.gmra.mrb[0].mxu0 %v777
      %v973 = vpop.f32.mrb[0].mxu0
      %v974 = vadd.f32 %v860, %v973
      %v975 = vpop.f32.mrb[0].mxu0
      %976 = vmatprep.mubr.f32.mxu0 %v780
      %977 = vmatmul.mubr.f32.gmra.mrb[0].mxu0 %v779
      %v978 = vpop.f32.mrb[0].mxu0
      %v979 = vadd.f32 %v860, %v978
      %v980 = vpop.f32.mrb[0].mxu0
      %981 = vmatprep.mubr.f32.mxu0 %v782
      %982 = vmatmul.mubr.f32.gmra.mrb[0].mxu0 %v781
      %v983 = vpop.f32.mrb[0].mxu0
      %v984 = vadd.f32 %v860, %v983
      %v985 = vpop.f32.mrb[0].mxu0
      %986 = vmatprep.mubr.f32.mxu0 %v784
      %987 = vmatmul.mubr.f32.gmra.mrb[0].mxu0 %v783
      %v988 = vpop.f32.mrb[0].mxu0
      %v989 = vadd.f32 %v860, %v988
      %v990 = vpop.f32.mrb[0].mxu0
      %991 = vmatprep.mubr.f32.mxu0 %v786
      %992 = vmatmul.mubr.f32.gmra.mrb[0].mxu0 %v785
      %v993 = vpop.f32.mrb[0].mxu0
      %v994 = vadd.f32 %v860, %v993
      %v995 = vpop.f32.mrb[0].mxu0
      %996 = vmatprep.mubr.f32.mxu0 %v788
      %997 = vmatmul.mubr.f32.gmra.mrb[0].mxu0 %v787
      %v998 = vpop.f32.mrb[0].mxu0
      %v999 = vadd.f32 %v860, %v998
      %v1000 = vpop.f32.mrb[0].mxu0
      %1001 = vmatprep.mubr.f32.mxu0 %v790
      %1002 = vmatmul.mubr.f32.gmra.mrb[0].mxu0 %v789
      %v1003 = vpop.f32.mrb[0].mxu0
      %v1004 = vadd.f32 %v860, %v1003
      %v1005 = vpop.f32.mrb[0].mxu0
      %1006 = vmatprep.mubr.f32.mxu0 %v792
      %1007 = vmatmul.mubr.f32.gmra.mrb[0].mxu0 %v791
      %v1008 = vpop.f32.mrb[0].mxu0
      %v1009 = vadd.f32 %v860, %v1008
      %v1010 = vpop.f32.mrb[0].mxu0
      %1011 = vmatprep.mubr.f32.mxu0 %v794
      %1012 = vmatmul.mubr.f32.gmra.mrb[0].mxu0 %v793
      %v1013 = vpop.f32.mrb[0].mxu0
      %v1014 = vadd.f32 %v860, %v1013
      %v1015 = vpop.f32.mrb[0].mxu0
      %1016 = vmatprep.mubr.f32.mxu0 %v796
      %1017 = vmatmul.mubr.f32.gmra.mrb[0].mxu0 %v795
      %v1018 = vpop.f32.mrb[0].mxu0
      %v1019 = vadd.f32 %v860, %v1018
      %v1020 = vpop.f32.mrb[0].mxu0
      %1021 = vmatprep.mubr.f32.mxu0 %v798
      %1022 = vmatmul.mubr.f32.gmra.mrb[0].mxu0 %v797
      %v1023 = vpop.f32.mrb[0].mxu0
      %v1024 = vadd.f32 %v860, %v1023
      %v1025 = vpop.f32.mrb[0].mxu0
      %1026 = vmatprep.mubr.f32.mxu0 %v800
      %1027 = vmatmul.mubr.f32.gmra.mrb[0].mxu0 %v799
      %v1028 = vpop.f32.mrb[0].mxu0
      %v1029 = vadd.f32 %v860, %v1028
      %v1030 = vpop.f32.mrb[0].mxu0
      %1031 = vmatprep.mubr.f32.mxu0 %v802
      %1032 = vmatmul.mubr.f32.gmra.mrb[0].mxu0 %v801
      %v1033 = vpop.f32.mrb[0].mxu0
      %v1034 = vadd.f32 %v860, %v1033
      %v1035 = vpop.f32.mrb[0].mxu0
      %1036 = vmatprep.mubr.f32.mxu0 %v804
      %1037 = vmatmul.mubr.f32.gmra.mrb[0].mxu0 %v803
      %v1038 = vpop.f32.mrb[0].mxu0
      %v1039 = vadd.f32 %v860, %v1038
      %v1040 = vpop.f32.mrb[0].mxu0
      %1041 = vmatprep.mubr.f32.mxu0 %v806
      %1042 = vmatmul.mubr.f32.gmra.mrb[0].mxu0 %v805
      %v1043 = vpop.f32.mrb[0].mxu0
      %v1044 = vadd.f32 %v860, %v1043
      %v1045 = vpop.f32.mrb[0].mxu0
      %1046 = vmatprep.mubr.f32.mxu0 %v808
      %1047 = vmatmul.mubr.f32.gmra.mrb[0].mxu0 %v807
      %v1048 = vpop.f32.mrb[0].mxu0
      %v1049 = vadd.f32 %v860, %v1048
      %v1050 = vpop.f32.mrb[0].mxu0
      %1051 = vmatprep.mubr.f32.mxu0 %v810
      %1052 = vmatmul.mubr.f32.gmra.mrb[0].mxu0 %v809
      %v1053 = vpop.f32.mrb[0].mxu0
      %v1054 = vadd.f32 %v860, %v1053
      %v1055 = vpop.f32.mrb[0].mxu0
      %1056 = vmatprep.mubr.f32.mxu0 %v812
      %1057 = vmatmul.mubr.f32.gmra.mrb[0].mxu0 %v811
      %v1058 = vpop.f32.mrb[0].mxu0
      %v1059 = vadd.f32 %v860, %v1058
      %v1060 = vpop.f32.mrb[0].mxu0
      %1061 = vmatprep.mubr.f32.mxu0 %v814
      %1062 = vmatmul.mubr.f32.gmra.mrb[0].mxu0 %v813
      %v1063 = vpop.f32.mrb[0].mxu0
      %v1064 = vadd.f32 %v860, %v1063
      %v1065 = vpop.f32.mrb[0].mxu0
      %1066 = vmatprep.mubr.f32.mxu0 %v816
      %1067 = vmatmul.mubr.f32.gmra.mrb[0].mxu0 %v815
      %v1068 = vpop.f32.mrb[0].mxu0
      %v1069 = vadd.f32 %v860, %v1068
      %v1070 = vpop.f32.mrb[0].mxu0
      %1071 = vmatprep.mubr.f32.mxu0 %v818
      %1072 = vmatmul.mubr.f32.gmra.mrb[0].mxu0 %v817
      %v1073 = vpop.f32.mrb[0].mxu0
      %v1074 = vadd.f32 %v860, %v1073
      %v1075 = vpop.f32.mrb[0].mxu0
      %1076 = vmatprep.mubr.f32.mxu0 %v820
      %1077 = vmatmul.mubr.f32.gmra.mrb[0].mxu0 %v819
      %v1078 = vpop.f32.mrb[0].mxu0
      %v1079 = vadd.f32 %v860, %v1078
      %v1080 = vpop.f32.mrb[0].mxu0
      %1081 = vmatprep.mubr.f32.mxu0 %v822
      %1082 = vmatmul.mubr.f32.gmra.mrb[0].mxu0 %v821
      %v1083 = vpop.f32.mrb[0].mxu0
      %v1084 = vadd.f32 %v860, %v1083
      %v1085 = vpop.f32.mrb[0].mxu0
      %1086 = vdwg.mxu0
      %v1087 = vmax.f32 %v929, 0.0
      %v1088 = vmax.f32 %v934, 0.0
      %v1089 = vmax.f32 %v939, 0.0
      %v1090 = vmax.f32 %v944, 0.0
      %v1091 = vmax.f32 %v949, 0.0
      %v1092 = vmax.f32 %v954, 0.0
      %v1093 = vmax.f32 %v959, 0.0
      %v1094 = vmax.f32 %v964, 0.0
      %v1095 = vmax.f32 %v969, 0.0
      %v1096 = vmax.f32 %v974, 0.0
      %v1097 = vmax.f32 %v979, 0.0
      %v1098 = vmax.f32 %v984, 0.0
      %v1099 = vmax.f32 %v989, 0.0
      %v1100 = vmax.f32 %v994, 0.0
      %v1101 = vmax.f32 %v999, 0.0
      %v1102 = vmax.f32 %v1004, 0.0
      %v1103 = vmax.f32 %v1009, 0.0
      %v1104 = vmax.f32 %v1014, 0.0
      %v1105 = vmax.f32 %v1019, 0.0
      %v1106 = vmax.f32 %v1024, 0.0
      %v1107 = vmax.f32 %v1029, 0.0
      %v1108 = vmax.f32 %v1034, 0.0
      %v1109 = vmax.f32 %v1039, 0.0
      %v1110 = vmax.f32 %v1044, 0.0
      %v1111 = vmax.f32 %v1049, 0.0
      %v1112 = vmax.f32 %v1054, 0.0
      %v1113 = vmax.f32 %v1059, 0.0
      %v1114 = vmax.f32 %v1064, 0.0
      %v1115 = vmax.f32 %v1069, 0.0
      %v1116 = vmax.f32 %v1074, 0.0
      %v1117 = vmax.f32 %v1079, 0.0
      %v1118 = vmax.f32 %v1084, 0.0
      %v1119 = vld [vmem:[%s5] sm:$0xff]
      %v1120 = vld [vmem:[%s5 + $0x8] sm:$0xff]
      %v1121 = vld [vmem:[%s5 + $0x10] sm:$0xff]
      %v1122 = vld [vmem:[%s5 + $0x18] sm:$0xff]
      %v1123 = vld [vmem:[%s5 + $0x20] sm:$0xff]
      %v1124 = vld [vmem:[%s5 + $0x28] sm:$0xff]
      %v1125 = vld [vmem:[%s5 + $0x30] sm:$0xff]
      %v1126 = vld [vmem:[%s5 + $0x38] sm:$0xff]
      %v1127 = vld [vmem:[%s5 + $0x40] sm:$0xff]
      %v1128 = vld [vmem:[%s5 + $0x48] sm:$0xff]
      %v1129 = vld [vmem:[%s5 + $0x50] sm:$0xff]
      %v1130 = vld [vmem:[%s5 + $0x58] sm:$0xff]
      %v1131 = vld [vmem:[%s5 + $0x60] sm:$0xff]
      %v1132 = vld [vmem:[%s5 + $0x68] sm:$0xff]
      %v1133 = vld [vmem:[%s5 + $0x70] sm:$0xff]
      %v1134 = vld [vmem:[%s5 + $0x78] sm:$0xff]
      %v1135 = vld [vmem:[%s6] sm:$0x1]
      %v1137 = vlaneseq
      %v1138 = vshrl.u32 %v1137, 7
      %v1139 = vsub.s32 0, %v1138
      %v1140 = vrot.slane %v1135, %v1139
      %1142 = vmatprep.subr.mxu0 0.0
      %1143 = vmatpush1.msra.mxu0 %v1119
      %1144 = vmatprep.subr.mxu0 0.0
      %1145 = vmatpush1.msra.mxu0 %v1120
      %1146 = vmatprep.subr.mxu0 0.0
      %1147 = vmatpush1.msra.mxu0 %v1121
      %1148 = vmatprep.subr.mxu0 0.0
      %1149 = vmatpush1.msra.mxu0 %v1122
      %1150 = vmatprep.subr.mxu0 0.0
      %1151 = vmatpush1.msra.mxu0 %v1123
      %1152 = vmatprep.subr.mxu0 0.0
      %1153 = vmatpush1.msra.mxu0 %v1124
      %1154 = vmatprep.subr.mxu0 0.0
      %1155 = vmatpush1.msra.mxu0 %v1125
      %1156 = vmatprep.subr.mxu0 0.0
      %1157 = vmatpush1.msra.mxu0 %v1126
      %1158 = vmatprep.subr.mxu0 0.0
      %1159 = vmatpush1.msra.mxu0 %v1127
      %1160 = vmatprep.subr.mxu0 0.0
      %1161 = vmatpush1.msra.mxu0 %v1128
      %1162 = vmatprep.subr.mxu0 0.0
      %1163 = vmatpush1.msra.mxu0 %v1129
      %1164 = vmatprep.subr.mxu0 0.0
      %1165 = vmatpush1.msra.mxu0 %v1130
      %1166 = vmatprep.subr.mxu0 0.0
      %1167 = vmatpush1.msra.mxu0 %v1131
      %1168 = vmatprep.subr.mxu0 0.0
      %1169 = vmatpush1.msra.mxu0 %v1132
      %1170 = vmatprep.subr.mxu0 0.0
      %1171 = vmatpush1.msra.mxu0 %v1133
      %1172 = vmatprep.subr.mxu0 0.0
      %1173 = vmatpush1.msra.mxu0 %v1134
      %1174 = vmatprep.subr.mxu0 0.0
      %1175 = vmatpush1.msra.mxu0 0.0
      %1176 = vmatprep.subr.mxu0 0.0
      %1177 = vmatpush1.msra.mxu0 0.0
      %1178 = vmatprep.subr.mxu0 0.0
      %1179 = vmatpush1.msra.mxu0 0.0
      %1180 = vmatprep.subr.mxu0 0.0
      %1181 = vmatpush1.msra.mxu0 0.0
      %1182 = vmatprep.subr.mxu0 0.0
      %1183 = vmatpush1.msra.mxu0 0.0
      %1184 = vmatprep.subr.mxu0 0.0
      %1185 = vmatpush1.msra.mxu0 0.0
      %1186 = vmatprep.subr.mxu0 0.0
      %1187 = vmatpush1.msra.mxu0 0.0
      %1188 = vmatprep.subr.mxu0 0.0
      %1189 = vmatpush1.msra.mxu0 0.0
      %1190 = vmatprep.subr.mxu0 0.0
      %1191 = vmatpush1.msra.mxu0 0.0
      %1192 = vmatprep.subr.mxu0 0.0
      %1193 = vmatpush1.msra.mxu0 0.0
      %1194 = vmatprep.subr.mxu0 0.0
      %1195 = vmatpush1.msra.mxu0 0.0
      %1196 = vmatprep.subr.mxu0 0.0
      %1197 = vmatpush1.msra.mxu0 0.0
      %1198 = vmatprep.subr.mxu0 0.0
      %1199 = vmatpush1.msra.mxu0 0.0
      %1200 = vmatprep.subr.mxu0 0.0
      %1201 = vmatpush1.msra.mxu0 0.0
      %1202 = vmatprep.subr.mxu0 0.0
      %1203 = vmatpush1.msra.mxu0 0.0
      %1204 = vmatprep.subr.mxu0 0.0
      %1205 = vmatpush1.msra.mxu0 0.0
      %1206 = vmatprep.mubr.f32.mxu0 0.0
      %1207 = vmatmul.mubr.f32.gmra.mrb[0].mxu0 %v1087
      %v1208 = vpop.f32.mrb[0].mxu0
      %v1209 = vadd.f32 %v1140, %v1208
      %v1210 = vpop.f32.mrb[0].mxu0
      %1211 = vmatprep.mubr.f32.mxu0 0.0
      %1212 = vmatmul.mubr.f32.gmra.mrb[0].mxu0 %v1088
      %v1213 = vpop.f32.mrb[0].mxu0
      %v1214 = vadd.f32 %v1140, %v1213
      %v1215 = vpop.f32.mrb[0].mxu0
      %1216 = vmatprep.mubr.f32.mxu0 0.0
      %1217 = vmatmul.mubr.f32.gmra.mrb[0].mxu0 %v1089
      %v1218 = vpop.f32.mrb[0].mxu0
      %v1219 = vadd.f32 %v1140, %v1218
      %v1220 = vpop.f32.mrb[0].mxu0
      %1221 = vmatprep.mubr.f32.mxu0 0.0
      %1222 = vmatmul.mubr.f32.gmra.mrb[0].mxu0 %v1090
      %v1223 = vpop.f32.mrb[0].mxu0
      %v1224 = vadd.f32 %v1140, %v1223
      %v1225 = vpop.f32.mrb[0].mxu0
      %1226 = vmatprep.mubr.f32.mxu0 0.0
      %1227 = vmatmul.mubr.f32.gmra.mrb[0].mxu0 %v1091
      %v1228 = vpop.f32.mrb[0].mxu0
      %v1229 = vadd.f32 %v1140, %v1228
      %v1230 = vpop.f32.mrb[0].mxu0
      %1231 = vmatprep.mubr.f32.mxu0 0.0
      %1232 = vmatmul.mubr.f32.gmra.mrb[0].mxu0 %v1092
      %v1233 = vpop.f32.mrb[0].mxu0
      %v1234 = vadd.f32 %v1140, %v1233
      %v1235 = vpop.f32.mrb[0].mxu0
      %1236 = vmatprep.mubr.f32.mxu0 0.0
      %1237 = vmatmul.mubr.f32.gmra.mrb[0].mxu0 %v1093
      %v1238 = vpop.f32.mrb[0].mxu0
      %v1239 = vadd.f32 %v1140, %v1238
      %v1240 = vpop.f32.mrb[0].mxu0
      %1241 = vmatprep.mubr.f32.mxu0 0.0
      %1242 = vmatmul.mubr.f32.gmra.mrb[0].mxu0 %v1094
      %v1243 = vpop.f32.mrb[0].mxu0
      %v1244 = vadd.f32 %v1140, %v1243
      %v1245 = vpop.f32.mrb[0].mxu0
      %1246 = vmatprep.mubr.f32.mxu0 0.0
      %1247 = vmatmul.mubr.f32.gmra.mrb[0].mxu0 %v1095
      %v1248 = vpop.f32.mrb[0].mxu0
      %v1249 = vadd.f32 %v1140, %v1248
      %v1250 = vpop.f32.mrb[0].mxu0
      %1251 = vmatprep.mubr.f32.mxu0 0.0
      %1252 = vmatmul.mubr.f32.gmra.mrb[0].mxu0 %v1096
      %v1253 = vpop.f32.mrb[0].mxu0
      %v1254 = vadd.f32 %v1140, %v1253
      %v1255 = vpop.f32.mrb[0].mxu0
      %1256 = vmatprep.mubr.f32.mxu0 0.0
      %1257 = vmatmul.mubr.f32.gmra.mrb[0].mxu0 %v1097
      %v1258 = vpop.f32.mrb[0].mxu0
      %v1259 = vadd.f32 %v1140, %v1258
      %v1260 = vpop.f32.mrb[0].mxu0
      %1261 = vmatprep.mubr.f32.mxu0 0.0
      %1262 = vmatmul.mubr.f32.gmra.mrb[0].mxu0 %v1098
      %v1263 = vpop.f32.mrb[0].mxu0
      %v1264 = vadd.f32 %v1140, %v1263
      %v1265 = vpop.f32.mrb[0].mxu0
      %1266 = vmatprep.mubr.f32.mxu0 0.0
      %1267 = vmatmul.mubr.f32.gmra.mrb[0].mxu0 %v1099
      %v1268 = vpop.f32.mrb[0].mxu0
      %v1269 = vadd.f32 %v1140, %v1268
      %v1270 = vpop.f32.mrb[0].mxu0
      %1271 = vmatprep.mubr.f32.mxu0 0.0
      %1272 = vmatmul.mubr.f32.gmra.mrb[0].mxu0 %v1100
      %v1273 = vpop.f32.mrb[0].mxu0
      %v1274 = vadd.f32 %v1140, %v1273
      %v1275 = vpop.f32.mrb[0].mxu0
      %1276 = vmatprep.mubr.f32.mxu0 0.0
      %1277 = vmatmul.mubr.f32.gmra.mrb[0].mxu0 %v1101
      %v1278 = vpop.f32.mrb[0].mxu0
      %v1279 = vadd.f32 %v1140, %v1278
      %v1280 = vpop.f32.mrb[0].mxu0
      %1281 = vmatprep.mubr.f32.mxu0 0.0
      %1282 = vmatmul.mubr.f32.gmra.mrb[0].mxu0 %v1102
      %v1283 = vpop.f32.mrb[0].mxu0
      %v1284 = vadd.f32 %v1140, %v1283
      %v1285 = vpop.f32.mrb[0].mxu0
      %1286 = vmatprep.mubr.f32.mxu0 0.0
      %1287 = vmatmul.mubr.f32.gmra.mrb[0].mxu0 %v1103
      %v1288 = vpop.f32.mrb[0].mxu0
      %v1289 = vadd.f32 %v1140, %v1288
      %v1290 = vpop.f32.mrb[0].mxu0
      %1291 = vmatprep.mubr.f32.mxu0 0.0
      %1292 = vmatmul.mubr.f32.gmra.mrb[0].mxu0 %v1104
      %v1293 = vpop.f32.mrb[0].mxu0
      %v1294 = vadd.f32 %v1140, %v1293
      %v1295 = vpop.f32.mrb[0].mxu0
      %1296 = vmatprep.mubr.f32.mxu0 0.0
      %1297 = vmatmul.mubr.f32.gmra.mrb[0].mxu0 %v1105
      %v1298 = vpop.f32.mrb[0].mxu0
      %v1299 = vadd.f32 %v1140, %v1298
      %v1300 = vpop.f32.mrb[0].mxu0
      %1301 = vmatprep.mubr.f32.mxu0 0.0
      %1302 = vmatmul.mubr.f32.gmra.mrb[0].mxu0 %v1106
      %v1303 = vpop.f32.mrb[0].mxu0
      %v1304 = vadd.f32 %v1140, %v1303
      %v1305 = vpop.f32.mrb[0].mxu0
      %1306 = vmatprep.mubr.f32.mxu0 0.0
      %1307 = vmatmul.mubr.f32.gmra.mrb[0].mxu0 %v1107
      %v1308 = vpop.f32.mrb[0].mxu0
      %v1309 = vadd.f32 %v1140, %v1308
      %v1310 = vpop.f32.mrb[0].mxu0
      %1311 = vmatprep.mubr.f32.mxu0 0.0
      %1312 = vmatmul.mubr.f32.gmra.mrb[0].mxu0 %v1108
      %v1313 = vpop.f32.mrb[0].mxu0
      %v1314 = vadd.f32 %v1140, %v1313
      %v1315 = vpop.f32.mrb[0].mxu0
      %1316 = vmatprep.mubr.f32.mxu0 0.0
      %1317 = vmatmul.mubr.f32.gmra.mrb[0].mxu0 %v1109
      %v1318 = vpop.f32.mrb[0].mxu0
      %v1319 = vadd.f32 %v1140, %v1318
      %v1320 = vpop.f32.mrb[0].mxu0
      %1321 = vmatprep.mubr.f32.mxu0 0.0
      %1322 = vmatmul.mubr.f32.gmra.mrb[0].mxu0 %v1110
      %v1323 = vpop.f32.mrb[0].mxu0
      %v1324 = vadd.f32 %v1140, %v1323
      %v1325 = vpop.f32.mrb[0].mxu0
      %1326 = vmatprep.mubr.f32.mxu0 0.0
      %1327 = vmatmul.mubr.f32.gmra.mrb[0].mxu0 %v1111
      %v1328 = vpop.f32.mrb[0].mxu0
      %v1329 = vadd.f32 %v1140, %v1328
      %v1330 = vpop.f32.mrb[0].mxu0
      %1331 = vmatprep.mubr.f32.mxu0 0.0
      %1332 = vmatmul.mubr.f32.gmra.mrb[0].mxu0 %v1112
      %v1333 = vpop.f32.mrb[0].mxu0
      %v1334 = vadd.f32 %v1140, %v1333
      %v1335 = vpop.f32.mrb[0].mxu0
      %1336 = vmatprep.mubr.f32.mxu0 0.0
      %1337 = vmatmul.mubr.f32.gmra.mrb[0].mxu0 %v1113
      %v1338 = vpop.f32.mrb[0].mxu0
      %v1339 = vadd.f32 %v1140, %v1338
      %v1340 = vpop.f32.mrb[0].mxu0
      %1341 = vmatprep.mubr.f32.mxu0 0.0
      %1342 = vmatmul.mubr.f32.gmra.mrb[0].mxu0 %v1114
      %v1343 = vpop.f32.mrb[0].mxu0
      %v1344 = vadd.f32 %v1140, %v1343
      %v1345 = vpop.f32.mrb[0].mxu0
      %1346 = vmatprep.mubr.f32.mxu0 0.0
      %1347 = vmatmul.mubr.f32.gmra.mrb[0].mxu0 %v1115
      %v1348 = vpop.f32.mrb[0].mxu0
      %v1349 = vadd.f32 %v1140, %v1348
      %v1350 = vpop.f32.mrb[0].mxu0
      %1351 = vmatprep.mubr.f32.mxu0 0.0
      %1352 = vmatmul.mubr.f32.gmra.mrb[0].mxu0 %v1116
      %v1353 = vpop.f32.mrb[0].mxu0
      %v1354 = vadd.f32 %v1140, %v1353
      %v1355 = vpop.f32.mrb[0].mxu0
      %1356 = vmatprep.mubr.f32.mxu0 0.0
      %1357 = vmatmul.mubr.f32.gmra.mrb[0].mxu0 %v1117
      %v1358 = vpop.f32.mrb[0].mxu0
      %v1359 = vadd.f32 %v1140, %v1358
      %v1360 = vpop.f32.mrb[0].mxu0
      %1361 = vmatprep.mubr.f32.mxu0 0.0
      %1362 = vmatmul.mubr.f32.gmra.mrb[0].mxu0 %v1118
      %v1363 = vpop.f32.mrb[0].mxu0
      %v1364 = vadd.f32 %v1140, %v1363
      %v1365 = vpop.f32.mrb[0].mxu0
      %1366 = vdwg.mxu0
      %v1367 = vmax.f32 %v1209, 0.0
      %v1368 = vmax.f32 %v1214, 0.0
      %v1369 = vmax.f32 %v1219, 0.0
      %v1370 = vmax.f32 %v1224, 0.0
      %v1371 = vmax.f32 %v1229, 0.0
      %v1372 = vmax.f32 %v1234, 0.0
      %v1373 = vmax.f32 %v1239, 0.0
      %v1374 = vmax.f32 %v1244, 0.0
      %v1375 = vmax.f32 %v1249, 0.0
      %v1376 = vmax.f32 %v1254, 0.0
      %v1377 = vmax.f32 %v1259, 0.0
      %v1378 = vmax.f32 %v1264, 0.0
      %v1379 = vmax.f32 %v1269, 0.0
      %v1380 = vmax.f32 %v1274, 0.0
      %v1381 = vmax.f32 %v1279, 0.0
      %v1382 = vmax.f32 %v1284, 0.0
      %v1383 = vmax.f32 %v1289, 0.0
      %v1384 = vmax.f32 %v1294, 0.0
      %v1385 = vmax.f32 %v1299, 0.0
      %v1386 = vmax.f32 %v1304, 0.0
      %v1387 = vmax.f32 %v1309, 0.0
      %v1388 = vmax.f32 %v1314, 0.0
      %v1389 = vmax.f32 %v1319, 0.0
      %v1390 = vmax.f32 %v1324, 0.0
      %v1391 = vmax.f32 %v1329, 0.0
      %v1392 = vmax.f32 %v1334, 0.0
      %v1393 = vmax.f32 %v1339, 0.0
      %v1394 = vmax.f32 %v1344, 0.0
      %v1395 = vmax.f32 %v1349, 0.0
      %v1396 = vmax.f32 %v1354, 0.0
      %v1397 = vmax.f32 %v1359, 0.0
      %v1398 = vmax.f32 %v1364, 0.0
      %v1399 = vld [vmem:[%s7] sm:$0xff]
      %v1400 = vld [vmem:[%s7 + $0x8] sm:$0xff]
      %v1401 = vld [vmem:[%s7 + $0x10] sm:$0xff]
      %v1402 = vld [vmem:[%s7 + $0x18] sm:$0xff]
      %v1403 = vld [vmem:[%s7 + $0x20] sm:$0xff]
      %v1404 = vld [vmem:[%s7 + $0x28] sm:$0xff]
      %v1405 = vld [vmem:[%s7 + $0x30] sm:$0xff]
      %v1406 = vld [vmem:[%s7 + $0x38] sm:$0xff]
      %v1407 = vld [vmem:[%s8] sm:$0x1]
      %v1409 = vlaneseq
      %v1410 = vshrl.u32 %v1409, 7
      %v1411 = vsub.s32 0, %v1410
      %v1412 = vrot.slane %v1407, %v1411
      %vm1414 = vcmask 523264
      %v1416 = vsel %vm1414, %v1367, 0
      %v1419 = vsel %vm1414, %v1368, 0
      %v1422 = vsel %vm1414, %v1369, 0
      %v1425 = vsel %vm1414, %v1370, 0
      %v1428 = vsel %vm1414, %v1371, 0
      %v1431 = vsel %vm1414, %v1372, 0
      %v1434 = vsel %vm1414, %v1373, 0
      %v1437 = vsel %vm1414, %v1374, 0
      %v1440 = vsel %vm1414, %v1375, 0
      %v1443 = vsel %vm1414, %v1376, 0
      %v1446 = vsel %vm1414, %v1377, 0
      %v1449 = vsel %vm1414, %v1378, 0
      %v1452 = vsel %vm1414, %v1379, 0
      %v1455 = vsel %vm1414, %v1380, 0
      %v1458 = vsel %vm1414, %v1381, 0
      %v1461 = vsel %vm1414, %v1382, 0
      %v1464 = vsel %vm1414, %v1383, 0
      %v1467 = vsel %vm1414, %v1384, 0
      %v1470 = vsel %vm1414, %v1385, 0
      %v1473 = vsel %vm1414, %v1386, 0
      %v1476 = vsel %vm1414, %v1387, 0
      %v1479 = vsel %vm1414, %v1388, 0
      %v1482 = vsel %vm1414, %v1389, 0
      %v1485 = vsel %vm1414, %v1390, 0
      %v1488 = vsel %vm1414, %v1391, 0
      %v1491 = vsel %vm1414, %v1392, 0
      %v1494 = vsel %vm1414, %v1393, 0
      %v1497 = vsel %vm1414, %v1394, 0
      %v1500 = vsel %vm1414, %v1395, 0
      %v1503 = vsel %vm1414, %v1396, 0
      %v1506 = vsel %vm1414, %v1397, 0
      %v1509 = vsel %vm1414, %v1398, 0
      %1511 = vmatprep.subr.mxu0 0.0
      %1512 = vmatpush1.msra.mxu0 %v1399
      %1513 = vmatprep.subr.mxu0 0.0
      %1514 = vmatpush1.msra.mxu0 %v1400
      %1515 = vmatprep.subr.mxu0 0.0
      %1516 = vmatpush1.msra.mxu0 %v1401
      %1517 = vmatprep.subr.mxu0 0.0
      %1518 = vmatpush1.msra.mxu0 %v1402
      %1519 = vmatprep.subr.mxu0 0.0
      %1520 = vmatpush1.msra.mxu0 %v1403
      %1521 = vmatprep.subr.mxu0 0.0
      %1522 = vmatpush1.msra.mxu0 %v1404
      %1523 = vmatprep.subr.mxu0 0.0
      %1524 = vmatpush1.msra.mxu0 %v1405
      %1525 = vmatprep.subr.mxu0 0.0
      %1526 = vmatpush1.msra.mxu0 %v1406
      %1527 = vmatprep.subr.mxu0 0.0
      %1528 = vmatpush1.msra.mxu0 0.0
      %1529 = vmatprep.subr.mxu0 0.0
      %1530 = vmatpush1.msra.mxu0 0.0
      %1531 = vmatprep.subr.mxu0 0.0
      %1532 = vmatpush1.msra.mxu0 0.0
      %1533 = vmatprep.subr.mxu0 0.0
      %1534 = vmatpush1.msra.mxu0 0.0
      %1535 = vmatprep.subr.mxu0 0.0
      %1536 = vmatpush1.msra.mxu0 0.0
      %1537 = vmatprep.subr.mxu0 0.0
      %1538 = vmatpush1.msra.mxu0 0.0
      %1539 = vmatprep.subr.mxu0 0.0
      %1540 = vmatpush1.msra.mxu0 0.0
      %1541 = vmatprep.subr.mxu0 0.0
      %1542 = vmatpush1.msra.mxu0 0.0
      %1543 = vmatprep.subr.mxu0 0.0
      %1544 = vmatpush1.msra.mxu0 0.0
      %1545 = vmatprep.subr.mxu0 0.0
      %1546 = vmatpush1.msra.mxu0 0.0
      %1547 = vmatprep.subr.mxu0 0.0
      %1548 = vmatpush1.msra.mxu0 0.0
      %1549 = vmatprep.subr.mxu0 0.0
      %1550 = vmatpush1.msra.mxu0 0.0
      %1551 = vmatprep.subr.mxu0 0.0
      %1552 = vmatpush1.msra.mxu0 0.0
      %1553 = vmatprep.subr.mxu0 0.0
      %1554 = vmatpush1.msra.mxu0 0.0
      %1555 = vmatprep.subr.mxu0 0.0
      %1556 = vmatpush1.msra.mxu0 0.0
      %1557 = vmatprep.subr.mxu0 0.0
      %1558 = vmatpush1.msra.mxu0 0.0
      %1559 = vmatprep.subr.mxu0 0.0
      %1560 = vmatpush1.msra.mxu0 0.0
      %1561 = vmatprep.subr.mxu0 0.0
      %1562 = vmatpush1.msra.mxu0 0.0
      %1563 = vmatprep.subr.mxu0 0.0
      %1564 = vmatpush1.msra.mxu0 0.0
      %1565 = vmatprep.subr.mxu0 0.0
      %1566 = vmatpush1.msra.mxu0 0.0
      %1567 = vmatprep.subr.mxu0 0.0
      %1568 = vmatpush1.msra.mxu0 0.0
      %1569 = vmatprep.subr.mxu0 0.0
      %1570 = vmatpush1.msra.mxu0 0.0
      %1571 = vmatprep.subr.mxu0 0.0
      %1572 = vmatpush1.msra.mxu0 0.0
      %1573 = vmatprep.subr.mxu0 0.0
      %1574 = vmatpush1.msra.mxu0 0.0
      %1575 = vmatprep.mubr.f32.mxu0 0.0
      %1576 = vmatmul.mubr.f32.gmra.mrb[0].mxu0 %v1416
      %v1577 = vpop.f32.mrb[0].mxu0
      %v1578 = vadd.f32 %v1412, %v1577
      %v1579 = vpop.f32.mrb[0].mxu0
      %1580 = vmatprep.mubr.f32.mxu0 0.0
      %1581 = vmatmul.mubr.f32.gmra.mrb[0].mxu0 %v1419
      %v1582 = vpop.f32.mrb[0].mxu0
      %v1583 = vadd.f32 %v1412, %v1582
      %v1584 = vpop.f32.mrb[0].mxu0
      %1585 = vmatprep.mubr.f32.mxu0 0.0
      %1586 = vmatmul.mubr.f32.gmra.mrb[0].mxu0 %v1422
      %v1587 = vpop.f32.mrb[0].mxu0
      %v1588 = vadd.f32 %v1412, %v1587
      %v1589 = vpop.f32.mrb[0].mxu0
      %1590 = vmatprep.mubr.f32.mxu0 0.0
      %1591 = vmatmul.mubr.f32.gmra.mrb[0].mxu0 %v1425
      %v1592 = vpop.f32.mrb[0].mxu0
      %v1593 = vadd.f32 %v1412, %v1592
      %v1594 = vpop.f32.mrb[0].mxu0
      %1595 = vmatprep.mubr.f32.mxu0 0.0
      %1596 = vmatmul.mubr.f32.gmra.mrb[0].mxu0 %v1428
      %v1597 = vpop.f32.mrb[0].mxu0
      %v1598 = vadd.f32 %v1412, %v1597
      %v1599 = vpop.f32.mrb[0].mxu0
      %1600 = vmatprep.mubr.f32.mxu0 0.0
      %1601 = vmatmul.mubr.f32.gmra.mrb[0].mxu0 %v1431
      %v1602 = vpop.f32.mrb[0].mxu0
      %v1603 = vadd.f32 %v1412, %v1602
      %v1604 = vpop.f32.mrb[0].mxu0
      %1605 = vmatprep.mubr.f32.mxu0 0.0
      %1606 = vmatmul.mubr.f32.gmra.mrb[0].mxu0 %v1434
      %v1607 = vpop.f32.mrb[0].mxu0
      %v1608 = vadd.f32 %v1412, %v1607
      %v1609 = vpop.f32.mrb[0].mxu0
      %1610 = vmatprep.mubr.f32.mxu0 0.0
      %1611 = vmatmul.mubr.f32.gmra.mrb[0].mxu0 %v1437
      %v1612 = vpop.f32.mrb[0].mxu0
      %v1613 = vadd.f32 %v1412, %v1612
      %v1614 = vpop.f32.mrb[0].mxu0
      %1615 = vmatprep.mubr.f32.mxu0 0.0
      %1616 = vmatmul.mubr.f32.gmra.mrb[0].mxu0 %v1440
      %v1617 = vpop.f32.mrb[0].mxu0
      %v1618 = vadd.f32 %v1412, %v1617
      %v1619 = vpop.f32.mrb[0].mxu0
      %1620 = vmatprep.mubr.f32.mxu0 0.0
      %1621 = vmatmul.mubr.f32.gmra.mrb[0].mxu0 %v1443
      %v1622 = vpop.f32.mrb[0].mxu0
      %v1623 = vadd.f32 %v1412, %v1622
      %v1624 = vpop.f32.mrb[0].mxu0
      %1625 = vmatprep.mubr.f32.mxu0 0.0
      %1626 = vmatmul.mubr.f32.gmra.mrb[0].mxu0 %v1446
      %v1627 = vpop.f32.mrb[0].mxu0
      %v1628 = vadd.f32 %v1412, %v1627
      %v1629 = vpop.f32.mrb[0].mxu0
      %1630 = vmatprep.mubr.f32.mxu0 0.0
      %1631 = vmatmul.mubr.f32.gmra.mrb[0].mxu0 %v1449
      %v1632 = vpop.f32.mrb[0].mxu0
      %v1633 = vadd.f32 %v1412, %v1632
      %v1634 = vpop.f32.mrb[0].mxu0
      %1635 = vmatprep.mubr.f32.mxu0 0.0
      %1636 = vmatmul.mubr.f32.gmra.mrb[0].mxu0 %v1452
      %v1637 = vpop.f32.mrb[0].mxu0
      %v1638 = vadd.f32 %v1412, %v1637
      %v1639 = vpop.f32.mrb[0].mxu0
      %1640 = vmatprep.mubr.f32.mxu0 0.0
      %1641 = vmatmul.mubr.f32.gmra.mrb[0].mxu0 %v1455
      %v1642 = vpop.f32.mrb[0].mxu0
      %v1643 = vadd.f32 %v1412, %v1642
      %v1644 = vpop.f32.mrb[0].mxu0
      %1645 = vmatprep.mubr.f32.mxu0 0.0
      %1646 = vmatmul.mubr.f32.gmra.mrb[0].mxu0 %v1458
      %v1647 = vpop.f32.mrb[0].mxu0
      %v1648 = vadd.f32 %v1412, %v1647
      %v1649 = vpop.f32.mrb[0].mxu0
      %1650 = vmatprep.mubr.f32.mxu0 0.0
      %1651 = vmatmul.mubr.f32.gmra.mrb[0].mxu0 %v1461
      %v1652 = vpop.f32.mrb[0].mxu0
      %v1653 = vadd.f32 %v1412, %v1652
      %v1654 = vpop.f32.mrb[0].mxu0
      %1655 = vmatprep.mubr.f32.mxu0 0.0
      %1656 = vmatmul.mubr.f32.gmra.mrb[0].mxu0 %v1464
      %v1657 = vpop.f32.mrb[0].mxu0
      %v1658 = vadd.f32 %v1412, %v1657
      %v1659 = vpop.f32.mrb[0].mxu0
      %1660 = vmatprep.mubr.f32.mxu0 0.0
      %1661 = vmatmul.mubr.f32.gmra.mrb[0].mxu0 %v1467
      %v1662 = vpop.f32.mrb[0].mxu0
      %v1663 = vadd.f32 %v1412, %v1662
      %v1664 = vpop.f32.mrb[0].mxu0
      %1665 = vmatprep.mubr.f32.mxu0 0.0
      %1666 = vmatmul.mubr.f32.gmra.mrb[0].mxu0 %v1470
      %v1667 = vpop.f32.mrb[0].mxu0
      %v1668 = vadd.f32 %v1412, %v1667
      %v1669 = vpop.f32.mrb[0].mxu0
      %1670 = vmatprep.mubr.f32.mxu0 0.0
      %1671 = vmatmul.mubr.f32.gmra.mrb[0].mxu0 %v1473
      %v1672 = vpop.f32.mrb[0].mxu0
      %v1673 = vadd.f32 %v1412, %v1672
      %v1674 = vpop.f32.mrb[0].mxu0
      %1675 = vmatprep.mubr.f32.mxu0 0.0
      %1676 = vmatmul.mubr.f32.gmra.mrb[0].mxu0 %v1476
      %v1677 = vpop.f32.mrb[0].mxu0
      %v1678 = vadd.f32 %v1412, %v1677
      %v1679 = vpop.f32.mrb[0].mxu0
      %1680 = vmatprep.mubr.f32.mxu0 0.0
      %1681 = vmatmul.mubr.f32.gmra.mrb[0].mxu0 %v1479
      %v1682 = vpop.f32.mrb[0].mxu0
      %v1683 = vadd.f32 %v1412, %v1682
      %v1684 = vpop.f32.mrb[0].mxu0
      %1685 = vmatprep.mubr.f32.mxu0 0.0
      %1686 = vmatmul.mubr.f32.gmra.mrb[0].mxu0 %v1482
      %v1687 = vpop.f32.mrb[0].mxu0
      %v1688 = vadd.f32 %v1412, %v1687
      %v1689 = vpop.f32.mrb[0].mxu0
      %1690 = vmatprep.mubr.f32.mxu0 0.0
      %1691 = vmatmul.mubr.f32.gmra.mrb[0].mxu0 %v1485
      %v1692 = vpop.f32.mrb[0].mxu0
      %v1693 = vadd.f32 %v1412, %v1692
      %v1694 = vpop.f32.mrb[0].mxu0
      %1695 = vmatprep.mubr.f32.mxu0 0.0
      %1696 = vmatmul.mubr.f32.gmra.mrb[0].mxu0 %v1488
      %v1697 = vpop.f32.mrb[0].mxu0
      %v1698 = vadd.f32 %v1412, %v1697
      %v1699 = vpop.f32.mrb[0].mxu0
      %1700 = vmatprep.mubr.f32.mxu0 0.0
      %1701 = vmatmul.mubr.f32.gmra.mrb[0].mxu0 %v1491
      %v1702 = vpop.f32.mrb[0].mxu0
      %v1703 = vadd.f32 %v1412, %v1702
      %v1704 = vpop.f32.mrb[0].mxu0
      %1705 = vmatprep.mubr.f32.mxu0 0.0
      %1706 = vmatmul.mubr.f32.gmra.mrb[0].mxu0 %v1494
      %v1707 = vpop.f32.mrb[0].mxu0
      %v1708 = vadd.f32 %v1412, %v1707
      %v1709 = vpop.f32.mrb[0].mxu0
      %1710 = vmatprep.mubr.f32.mxu0 0.0
      %1711 = vmatmul.mubr.f32.gmra.mrb[0].mxu0 %v1497
      %v1712 = vpop.f32.mrb[0].mxu0
      %v1713 = vadd.f32 %v1412, %v1712
      %v1714 = vpop.f32.mrb[0].mxu0
      %1715 = vmatprep.mubr.f32.mxu0 0.0
      %1716 = vmatmul.mubr.f32.gmra.mrb[0].mxu0 %v1500
      %v1717 = vpop.f32.mrb[0].mxu0
      %v1718 = vadd.f32 %v1412, %v1717
      %v1719 = vpop.f32.mrb[0].mxu0
      %1720 = vmatprep.mubr.f32.mxu0 0.0
      %1721 = vmatmul.mubr.f32.gmra.mrb[0].mxu0 %v1503
      %v1722 = vpop.f32.mrb[0].mxu0
      %v1723 = vadd.f32 %v1412, %v1722
      %v1724 = vpop.f32.mrb[0].mxu0
      %1725 = vmatprep.mubr.f32.mxu0 0.0
      %1726 = vmatmul.mubr.f32.gmra.mrb[0].mxu0 %v1506
      %v1727 = vpop.f32.mrb[0].mxu0
      %v1728 = vadd.f32 %v1412, %v1727
      %v1729 = vpop.f32.mrb[0].mxu0
      %1730 = vmatprep.mubr.f32.mxu0 0.0
      %1731 = vmatmul.mubr.f32.gmra.mrb[0].mxu0 %v1509
      %v1732 = vpop.f32.mrb[0].mxu0
      %v1733 = vadd.f32 %v1412, %v1732
      %v1734 = vpop.f32.mrb[0].mxu0
      %1735 = vdwg.mxu0
      %v1736 = vxor.u32 %v1578, 2147483648
      %v1737 = vxor.u32 %v1583, 2147483648
      %v1738 = vxor.u32 %v1588, 2147483648
      %v1739 = vxor.u32 %v1593, 2147483648
      %v1740 = vxor.u32 %v1598, 2147483648
      %v1741 = vxor.u32 %v1603, 2147483648
      %v1742 = vxor.u32 %v1608, 2147483648
      %v1743 = vxor.u32 %v1613, 2147483648
      %v1744 = vxor.u32 %v1618, 2147483648
      %v1745 = vxor.u32 %v1623, 2147483648
      %v1746 = vxor.u32 %v1628, 2147483648
      %v1747 = vxor.u32 %v1633, 2147483648
      %v1748 = vxor.u32 %v1638, 2147483648
      %v1749 = vxor.u32 %v1643, 2147483648
      %v1750 = vxor.u32 %v1648, 2147483648
      %v1751 = vxor.u32 %v1653, 2147483648
      %v1752 = vxor.u32 %v1658, 2147483648
      %v1753 = vxor.u32 %v1663, 2147483648
      %v1754 = vxor.u32 %v1668, 2147483648
      %v1755 = vxor.u32 %v1673, 2147483648
      %v1756 = vxor.u32 %v1678, 2147483648
      %v1757 = vxor.u32 %v1683, 2147483648
      %v1758 = vxor.u32 %v1688, 2147483648
      %v1759 = vxor.u32 %v1693, 2147483648
      %v1760 = vxor.u32 %v1698, 2147483648
      %v1761 = vxor.u32 %v1703, 2147483648
      %v1762 = vxor.u32 %v1708, 2147483648
      %v1763 = vxor.u32 %v1713, 2147483648
      %v1764 = vxor.u32 %v1718, 2147483648
      %v1765 = vxor.u32 %v1723, 2147483648
      %v1766 = vxor.u32 %v1728, 2147483648
      %v1767 = vxor.u32 %v1733, 2147483648
      %v1768 = vmul.f32 %v1736, 1.442695
      %v1769 = vpow.pop %v1768
      %v1770 = vmul.f32 %v1737, 1.442695
      %v1771 = vpow.pop %v1770
      %v1772 = vmul.f32 %v1738, 1.442695
      %v1773 = vpow.pop %v1772
      %v1774 = vmul.f32 %v1739, 1.442695
      %v1775 = vpow.pop %v1774
      %v1776 = vmul.f32 %v1740, 1.442695
      %v1777 = vpow.pop %v1776
      %v1778 = vmul.f32 %v1741, 1.442695
      %v1779 = vpow.pop %v1778
      %v1780 = vmul.f32 %v1742, 1.442695
      %v1781 = vpow.pop %v1780
      %v1782 = vmul.f32 %v1743, 1.442695
      %v1783 = vpow.pop %v1782
      %v1784 = vmul.f32 %v1744, 1.442695
      %v1785 = vpow.pop %v1784
      %v1786 = vmul.f32 %v1745, 1.442695
      %v1787 = vpow.pop %v1786
      %v1788 = vmul.f32 %v1746, 1.442695
      %v1789 = vpow.pop %v1788
      %v1790 = vmul.f32 %v1747, 1.442695
      %v1791 = vpow.pop %v1790
      %v1792 = vmul.f32 %v1748, 1.442695
      %v1793 = vpow.pop %v1792
      %v1794 = vmul.f32 %v1749, 1.442695
      %v1795 = vpow.pop %v1794
      %v1796 = vmul.f32 %v1750, 1.442695
      %v1797 = vpow.pop %v1796
      %v1798 = vmul.f32 %v1751, 1.442695
      %v1799 = vpow.pop %v1798
      %v1800 = vmul.f32 %v1752, 1.442695
      %v1801 = vpow.pop %v1800
      %v1802 = vmul.f32 %v1753, 1.442695
      %v1803 = vpow.pop %v1802
      %v1804 = vmul.f32 %v1754, 1.442695
      %v1805 = vpow.pop %v1804
      %v1806 = vmul.f32 %v1755, 1.442695
      %v1807 = vpow.pop %v1806
      %v1808 = vmul.f32 %v1756, 1.442695
      %v1809 = vpow.pop %v1808
      %v1810 = vmul.f32 %v1757, 1.442695
      %v1811 = vpow.pop %v1810
      %v1812 = vmul.f32 %v1758, 1.442695
      %v1813 = vpow.pop %v1812
      %v1814 = vmul.f32 %v1759, 1.442695
      %v1815 = vpow.pop %v1814
      %v1816 = vmul.f32 %v1760, 1.442695
      %v1817 = vpow.pop %v1816
      %v1818 = vmul.f32 %v1761, 1.442695
      %v1819 = vpow.pop %v1818
      %v1820 = vmul.f32 %v1762, 1.442695
      %v1821 = vpow.pop %v1820
      %v1822 = vmul.f32 %v1763, 1.442695
      %v1823 = vpow.pop %v1822
      %v1824 = vmul.f32 %v1764, 1.442695
      %v1825 = vpow.pop %v1824
      %v1826 = vmul.f32 %v1765, 1.442695
      %v1827 = vpow.pop %v1826
      %v1828 = vmul.f32 %v1766, 1.442695
      %v1829 = vpow.pop %v1828
      %v1830 = vmul.f32 %v1767, 1.442695
      %v1831 = vpow.pop %v1830
      %v1832 = vadd.f32 %v1769, 1.0
      %v1833 = vadd.f32 %v1771, 1.0
      %v1834 = vadd.f32 %v1773, 1.0
      %v1835 = vadd.f32 %v1775, 1.0
      %v1836 = vadd.f32 %v1777, 1.0
      %v1837 = vadd.f32 %v1779, 1.0
      %v1838 = vadd.f32 %v1781, 1.0
      %v1839 = vadd.f32 %v1783, 1.0
      %v1840 = vadd.f32 %v1785, 1.0
      %v1841 = vadd.f32 %v1787, 1.0
      %v1842 = vadd.f32 %v1789, 1.0
      %v1843 = vadd.f32 %v1791, 1.0
      %v1844 = vadd.f32 %v1793, 1.0
      %v1845 = vadd.f32 %v1795, 1.0
      %v1846 = vadd.f32 %v1797, 1.0
      %v1847 = vadd.f32 %v1799, 1.0
      %v1848 = vadd.f32 %v1801, 1.0
      %v1849 = vadd.f32 %v1803, 1.0
      %v1850 = vadd.f32 %v1805, 1.0
      %v1851 = vadd.f32 %v1807, 1.0
      %v1852 = vadd.f32 %v1809, 1.0
      %v1853 = vadd.f32 %v1811, 1.0
      %v1854 = vadd.f32 %v1813, 1.0
      %v1855 = vadd.f32 %v1815, 1.0
      %v1856 = vadd.f32 %v1817, 1.0
      %v1857 = vadd.f32 %v1819, 1.0
      %v1858 = vadd.f32 %v1821, 1.0
      %v1859 = vadd.f32 %v1823, 1.0
      %v1860 = vadd.f32 %v1825, 1.0
      %v1861 = vadd.f32 %v1827, 1.0
      %v1862 = vadd.f32 %v1829, 1.0
      %v1863 = vadd.f32 %v1831, 1.0
      %v1864 = vrcp.pop %v1832
      %v1865 = vmul.f32 1.0, %v1864
      %v1866 = vrcp.pop %v1833
      %v1867 = vmul.f32 1.0, %v1866
      %v1868 = vrcp.pop %v1834
      %v1869 = vmul.f32 1.0, %v1868
      %v1870 = vrcp.pop %v1835
      %v1871 = vmul.f32 1.0, %v1870
      %v1872 = vrcp.pop %v1836
      %v1873 = vmul.f32 1.0, %v1872
      %v1874 = vrcp.pop %v1837
      %v1875 = vmul.f32 1.0, %v1874
      %v1876 = vrcp.pop %v1838
      %v1877 = vmul.f32 1.0, %v1876
      %v1878 = vrcp.pop %v1839
      %v1879 = vmul.f32 1.0, %v1878
      %v1880 = vrcp.pop %v1840
      %v1881 = vmul.f32 1.0, %v1880
      %v1882 = vrcp.pop %v1841
      %v1883 = vmul.f32 1.0, %v1882
      %v1884 = vrcp.pop %v1842
      %v1885 = vmul.f32 1.0, %v1884
      %v1886 = vrcp.pop %v1843
      %v1887 = vmul.f32 1.0, %v1886
      %v1888 = vrcp.pop %v1844
      %v1889 = vmul.f32 1.0, %v1888
      %v1890 = vrcp.pop %v1845
      %v1891 = vmul.f32 1.0, %v1890
      %v1892 = vrcp.pop %v1846
      %v1893 = vmul.f32 1.0, %v1892
      %v1894 = vrcp.pop %v1847
      %v1895 = vmul.f32 1.0, %v1894
      %v1896 = vrcp.pop %v1848
      %v1897 = vmul.f32 1.0, %v1896
      %v1898 = vrcp.pop %v1849
      %v1899 = vmul.f32 1.0, %v1898
      %v1900 = vrcp.pop %v1850
      %v1901 = vmul.f32 1.0, %v1900
      %v1902 = vrcp.pop %v1851
      %v1903 = vmul.f32 1.0, %v1902
      %v1904 = vrcp.pop %v1852
      %v1905 = vmul.f32 1.0, %v1904
      %v1906 = vrcp.pop %v1853
      %v1907 = vmul.f32 1.0, %v1906
      %v1908 = vrcp.pop %v1854
      %v1909 = vmul.f32 1.0, %v1908
      %v1910 = vrcp.pop %v1855
      %v1911 = vmul.f32 1.0, %v1910
      %v1912 = vrcp.pop %v1856
      %v1913 = vmul.f32 1.0, %v1912
      %v1914 = vrcp.pop %v1857
      %v1915 = vmul.f32 1.0, %v1914
      %v1916 = vrcp.pop %v1858
      %v1917 = vmul.f32 1.0, %v1916
      %v1918 = vrcp.pop %v1859
      %v1919 = vmul.f32 1.0, %v1918
      %v1920 = vrcp.pop %v1860
      %v1921 = vmul.f32 1.0, %v1920
      %v1922 = vrcp.pop %v1861
      %v1923 = vmul.f32 1.0, %v1922
      %v1924 = vrcp.pop %v1862
      %v1925 = vmul.f32 1.0, %v1924
      %v1926 = vrcp.pop %v1863
      %v1927 = vmul.f32 1.0, %v1926
      %v1928 = vlaneseq
      %v1929 = vand.u32 %v1928, 127
      %vm1930 = vcmp.lt.s32.totalorder %v1929, 64
      %vm1931 = vcmp.eq.s32.totalorder %v1929, 64
      %v1932 = vsel %vm1931, %v1865, 0.0
      %v1933 = vsel %vm1931, %v1867, 0.0
      %v1934 = vsel %vm1931, %v1869, 0.0
      %v1935 = vsel %vm1931, %v1871, 0.0
      %v1936 = vsel %vm1931, %v1873, 0.0
      %v1937 = vsel %vm1931, %v1875, 0.0
      %v1938 = vsel %vm1931, %v1877, 0.0
      %v1939 = vsel %vm1931, %v1879, 0.0
      %v1940 = vsel %vm1931, %v1881, 0.0
      %v1941 = vsel %vm1931, %v1883, 0.0
      %v1942 = vsel %vm1931, %v1885, 0.0
      %v1943 = vsel %vm1931, %v1887, 0.0
      %v1944 = vsel %vm1931, %v1889, 0.0
      %v1945 = vsel %vm1931, %v1891, 0.0
      %v1946 = vsel %vm1931, %v1893, 0.0
      %v1947 = vsel %vm1931, %v1895, 0.0
      %v1948 = vsel %vm1931, %v1897, 0.0
      %v1949 = vsel %vm1931, %v1899, 0.0
      %v1950 = vsel %vm1931, %v1901, 0.0
      %v1951 = vsel %vm1931, %v1903, 0.0
      %v1952 = vsel %vm1931, %v1905, 0.0
      %v1953 = vsel %vm1931, %v1907, 0.0
      %v1954 = vsel %vm1931, %v1909, 0.0
      %v1955 = vsel %vm1931, %v1911, 0.0
      %v1956 = vsel %vm1931, %v1913, 0.0
      %v1957 = vsel %vm1931, %v1915, 0.0
      %v1958 = vsel %vm1931, %v1917, 0.0
      %v1959 = vsel %vm1931, %v1919, 0.0
      %v1960 = vsel %vm1931, %v1921, 0.0
      %v1961 = vsel %vm1931, %v1923, 0.0
      %v1962 = vsel %vm1931, %v1925, 0.0
      %v1963 = vsel %vm1931, %v1927, 0.0
      %v1964 = vsel %vm1930, %v1578, %v1932
      %v1965 = vsel %vm1930, %v1583, %v1933
      %v1966 = vsel %vm1930, %v1588, %v1934
      %v1967 = vsel %vm1930, %v1593, %v1935
      %v1968 = vsel %vm1930, %v1598, %v1936
      %v1969 = vsel %vm1930, %v1603, %v1937
      %v1970 = vsel %vm1930, %v1608, %v1938
      %v1971 = vsel %vm1930, %v1613, %v1939
      %v1972 = vsel %vm1930, %v1618, %v1940
      %v1973 = vsel %vm1930, %v1623, %v1941
      %v1974 = vsel %vm1930, %v1628, %v1942
      %v1975 = vsel %vm1930, %v1633, %v1943
      %v1976 = vsel %vm1930, %v1638, %v1944
      %v1977 = vsel %vm1930, %v1643, %v1945
      %v1978 = vsel %vm1930, %v1648, %v1946
      %v1979 = vsel %vm1930, %v1653, %v1947
      %v1980 = vsel %vm1930, %v1658, %v1948
      %v1981 = vsel %vm1930, %v1663, %v1949
      %v1982 = vsel %vm1930, %v1668, %v1950
      %v1983 = vsel %vm1930, %v1673, %v1951
      %v1984 = vsel %vm1930, %v1678, %v1952
      %v1985 = vsel %vm1930, %v1683, %v1953
      %v1986 = vsel %vm1930, %v1688, %v1954
      %v1987 = vsel %vm1930, %v1693, %v1955
      %v1988 = vsel %vm1930, %v1698, %v1956
      %v1989 = vsel %vm1930, %v1703, %v1957
      %v1990 = vsel %vm1930, %v1708, %v1958
      %v1991 = vsel %vm1930, %v1713, %v1959
      %v1992 = vsel %vm1930, %v1718, %v1960
      %v1993 = vsel %vm1930, %v1723, %v1961
      %v1994 = vsel %vm1930, %v1728, %v1962
      %v1995 = vsel %vm1930, %v1733, %v1963
      %1996 = vst [vmem:[%s334] sm:$0xff] %v1964
      %1997 = vst [vmem:[%s334 + $0x8] sm:$0xff] %v1965
      %1998 = vst [vmem:[%s334 + $0x10] sm:$0xff] %v1966
      %1999 = vst [vmem:[%s334 + $0x18] sm:$0xff] %v1967
      %2000 = vst [vmem:[%s334 + $0x20] sm:$0xff] %v1968
      %2001 = vst [vmem:[%s334 + $0x28] sm:$0xff] %v1969
      %2002 = vst [vmem:[%s334 + $0x30] sm:$0xff] %v1970
      %2003 = vst [vmem:[%s334 + $0x38] sm:$0xff] %v1971
      %2004 = vst [vmem:[%s334 + $0x40] sm:$0xff] %v1972
      %2005 = vst [vmem:[%s334 + $0x48] sm:$0xff] %v1973
      %2006 = vst [vmem:[%s334 + $0x50] sm:$0xff] %v1974
      %2007 = vst [vmem:[%s334 + $0x58] sm:$0xff] %v1975
      %2008 = vst [vmem:[%s334 + $0x60] sm:$0xff] %v1976
      %2009 = vst [vmem:[%s334 + $0x68] sm:$0xff] %v1977
      %2010 = vst [vmem:[%s334 + $0x70] sm:$0xff] %v1978
      %2011 = vst [vmem:[%s334 + $0x78] sm:$0xff] %v1979
      %2012 = vst [vmem:[%s334 + $0x80] sm:$0xff] %v1980
      %2013 = vst [vmem:[%s334 + $0x88] sm:$0xff] %v1981
      %2014 = vst [vmem:[%s334 + $0x90] sm:$0xff] %v1982
      %2015 = vst [vmem:[%s334 + $0x98] sm:$0xff] %v1983
      %2016 = vst [vmem:[%s334 + $0xa0] sm:$0xff] %v1984
      %2017 = vst [vmem:[%s334 + $0xa8] sm:$0xff] %v1985
      %2018 = vst [vmem:[%s334 + $0xb0] sm:$0xff] %v1986
      %2019 = vst [vmem:[%s334 + $0xb8] sm:$0xff] %v1987
      %2020 = vst [vmem:[%s334 + $0xc0] sm:$0xff] %v1988
      %2021 = vst [vmem:[%s334 + $0xc8] sm:$0xff] %v1989
      %2022 = vst [vmem:[%s334 + $0xd0] sm:$0xff] %v1990
      %2023 = vst [vmem:[%s334 + $0xd8] sm:$0xff] %v1991
      %2024 = vst [vmem:[%s334 + $0xe0] sm:$0xff] %v1992
      %2025 = vst [vmem:[%s334 + $0xe8] sm:$0xff] %v1993
      %2026 = vst [vmem:[%s334 + $0xf0] sm:$0xff] %v1994
      %2027 = vst [vmem:[%s334 + $0xf8] sm:$0xff] %v1995
      %s2028 = smul.u32 32, %s20
      %p2029 = scmp.lt.s32.totalorder %s2028, 63
      %s2030 = scalar_select %p2029, %s2028, 63
      %s2031 = smul.addr %s2030, 8
      %s2032 = scalar_lea.vmem %s9, %s2031
      // Predicated region
      $region57: #{facial_encoder_forward.1} parent=55 // pred_check
        %p2033 = pneg %p232
      $region58: #{facial_encoder_forward.1} parent=55 // pred_check_branch
        %2035 = sbr.rel (%p2033) target = $region60
      $region59: #{facial_encoder_forward.1} parent=55 // pred_region
        %s2036 = smul.u32 32, %s20
      $region60: #{facial_encoder_forward.1} parent=55 // pred_fallthru
        _
    $region56: #{facial_encoder_forward.1} parent=5 // pred_fallthru
      _
    %p2037 = scmp.le.s32.totalorder 2, %s15
    // Predicated region
    $region61: #{facial_encoder_forward.1} parent=5 // pred_check
      %p2038 = pneg %p2037
    $region62: #{facial_encoder_forward.1} parent=5 // pred_check_branch
      %2040 = sbr.rel (%p2038) target = $region64
    $region63: #{facial_encoder_forward.1} parent=5 // pred_region
      %s2041 = ssub.s32 %s15, 2
      // Predicated region
      $region65: #{facial_encoder_forward.1} parent=63 // pred_check
        %p2042 = pneg %p238
      $region66: #{facial_encoder_forward.1} parent=63 // pred_check_branch
        %2044 = sbr.rel (%p2042) target = $region68
      $region67: #{facial_encoder_forward.1} parent=63 // pred_region
        %s2045 = smul.u32 32, %s21
        %p2046 = scmp.lt.s32.totalorder %s2045, 63
        %s2047 = scalar_select %p2046, %s2045, 63
        %s2048 = smul.addr %s2047, 8
        %s2049 = scalar_lea.vmem %s9, %s2048
      $region68: #{facial_encoder_forward.1} parent=63 // pred_fallthru
        _
    $region64: #{facial_encoder_forward.1} parent=5 // pred_fallthru
      _
  $region6: #{facial_encoder_forward.1} parent=0 // loop_footer
    %s19 = sadd.s32 1, %s15
  $region7: #{facial_encoder_forward.1} parent=0 // loop_footer_branch
    %14 = sbr.rel target = $region3
  $region8: #{facial_encoder_forward.1} parent=0 // loop_exit
    _

</llo_original>
